<compile_context>
chip_gen: v5e
topology: v5e:2x2
jax: 0.10.0
libtpu: 0.0.40
codegen_flags: <defaults>
</compile_context>

<pallas_src>
import jax
import jax.numpy as jnp
from jax.experimental import pallas as pl
from jax.experimental.pallas import tpu as pltpu

FC_DIM = 256   # fc_dim in the module
NUM_FC = 3     # num_fc in the module (kernel is written out layer-by-layer)


def _pick_tp(P, max_tp=2048):
    """Points-per-tile: full P unless P is a large multiple of 128."""
    if P % 128 != 0 or P <= max_tp:
        return P
    tp = (max_tp // 128) * 128
    while P % tp:
        tp -= 128
    return tp


def point_head_kernel(fine_ref, coarse_ref,
                      w1f_ref, w1c_ref, w2h_ref, w2c_ref,
                      w3h_ref, w3c_ref, wph_ref, wpc_ref,
                      out_ref):
    f32 = jnp.float32
    cdt = w1f_ref.dtype  # compute dtype (bf16 by default, f32 optional)

    fine = fine_ref[0].astype(cdt)    # (Cf, tp)     - cast in-kernel (1 HBM pass)
    ca = coarse_ref[0].astype(cdt)    # (K + 1, tp)  - last row is all ones (bias lane)

    # fc1: relu(W1 @ [fine; coarse] + b1); bias folded into the coarse matmul.
    h = jnp.dot(w1f_ref[...], fine, preferred_element_type=f32)
    h = h + jnp.dot(w1c_ref[...], ca, preferred_element_type=f32)
    h = jnp.maximum(h, 0.0).astype(cdt)

    # fc2: relu(W2 @ [h; coarse] + b2)
    h = (jnp.dot(w2h_ref[...], h, preferred_element_type=f32)
         + jnp.dot(w2c_ref[...], ca, preferred_element_type=f32))
    h = jnp.maximum(h, 0.0).astype(cdt)

    # fc3: relu(W3 @ [h; coarse] + b3)
    h = (jnp.dot(w3h_ref[...], h, preferred_element_type=f32)
         + jnp.dot(w3c_ref[...], ca, preferred_element_type=f32))
    h = jnp.maximum(h, 0.0).astype(cdt)

    # predictor: Wp @ [h; coarse] + bp   (no activation)
    y = (jnp.dot(wph_ref[...], h, preferred_element_type=f32)
         + jnp.dot(wpc_ref[...], ca, preferred_element_type=f32))
    out_ref[0] = y.astype(out_ref.dtype)


def init_params(key, input_channels, num_classes, fc_dim=FC_DIM):
    """Synthetic init mirroring the module's __init__ (torch conv1d layout).

    Weights stored as (C_out, C_in) == W_torch[:, :, 0]; biases as (C_out,).
    """
    ks = jax.random.split(key, 4)

    def msra(k, fan_out, shape):
        # c2_msra_fill: kaiming_normal(mode="fan_out", nonlinearity="relu"), bias=0
        std = (2.0 / fan_out) ** 0.5
        return std * jax.random.normal(k, shape, jnp.float32)

    p = {}
    p["w1"] = msra(ks[0], fc_dim, (fc_dim, input_channels + num_classes))
    p["b1"] = jnp.zeros((fc_dim,), jnp.float32)
    p["w2"] = msra(ks[1], fc_dim, (fc_dim, fc_dim + num_classes))
    p["b2"] = jnp.zeros((fc_dim,), jnp.float32)
    p["w3"] = msra(ks[2], fc_dim, (fc_dim, fc_dim + num_classes))
    p["b3"] = jnp.zeros((fc_dim,), jnp.float32)
    p["wp"] = 0.001 * jax.random.normal(ks[3], (num_classes, fc_dim + num_classes),
                                        jnp.float32)
    p["bp"] = jnp.zeros((num_classes,), jnp.float32)
    return p


def point_head_forward(fine_grained_features, coarse_features, params, *,
                       max_tp=2048, compute_dtype=jnp.bfloat16):
    """fine: (N, Cf, P) f32, coarse: (N, K, P) f32 -> (N, K, P) f32."""
    N, Cf, P = fine_grained_features.shape
    K = coarse_features.shape[1]
    tp = _pick_tp(P, max_tp)

    # Append an all-ones channel to coarse so each layer's bias folds into the
    # coarse-side matmul as one extra weight column (no in-kernel bias adds).
    ones = jnp.ones((N, 1, P), fine_grained_features.dtype)
    coarse_aug = jnp.concatenate([coarse_features, ones], axis=1)   # (N, K+1, P)

    p = params

    def split(w, b, n_first):
        wf = w[:, :n_first].astype(compute_dtype)
        wc = jnp.concatenate([w[:, n_first:], b[:, None]], axis=1).astype(compute_dtype)
        return wf, wc

    w1f, w1c = split(p["w1"], p["b1"], Cf)       # (FC, Cf), (FC, K+1)
    w2h, w2c = split(p["w2"], p["b2"], FC_DIM)   # (FC, FC), (FC, K+1)
    w3h, w3c = split(p["w3"], p["b3"], FC_DIM)   # (FC, FC), (FC, K+1)
    wph, wpc = split(p["wp"], p["bp"], FC_DIM)   # (K,  FC), (K,  K+1)
    weights = (w1f, w1c, w2h, w2c, w3h, w3c, wph, wpc)

    # Weights are tiny and identical across grid steps: full-array blocks with
    # a constant index_map (no re-DMA per step).
    weight_specs = [pl.BlockSpec(w.shape, lambda n, q: (0, 0)) for w in weights]

    out = pl.pallas_call(
        point_head_kernel,
        out_shape=jax.ShapeDtypeStruct((N, K, P), jnp.float32),
        grid_spec=pltpu.PrefetchScalarGridSpec(
            num_scalar_prefetch=0,
            grid=(N, P // tp),
            in_specs=[pl.BlockSpec((1, Cf, tp), lambda n, q: (n, 0, q)),
                      pl.BlockSpec((1, K + 1, tp), lambda n, q: (n, 0, q))]
                     + weight_specs,
            out_specs=pl.BlockSpec((1, K, tp), lambda n, q: (n, 0, q)),
        ),
        compiler_params=pltpu.CompilerParams(
            dimension_semantics=("parallel", "parallel"),
        ),
    )(fine_grained_features, coarse_aug, *weights)
    return out


def point_head_reference(fine, coarse, params):
    """Pure-JAX f32 reference mirroring the PyTorch op order (concat + conv1d k=1)."""
    def conv1d(x, w, b):
        return jnp.einsum("oi,nip->nop", w, x) + b[None, :, None]

    p = params
    x = jnp.concatenate([fine, coarse], axis=1)
    x = jax.nn.relu(conv1d(x, p["w1"], p["b1"]))
    x = jnp.concatenate([x, coarse], axis=1)
    x = jax.nn.relu(conv1d(x, p["w2"], p["b2"]))
    x = jnp.concatenate([x, coarse], axis=1)
    x = jax.nn.relu(conv1d(x, p["w3"], p["b3"]))
    x = jnp.concatenate([x, coarse], axis=1)
    return conv1d(x, p["wp"], p["bp"])


if __name__ == "__main__":
    # Small shapes consistent with the module: conv1d operates on (N, C, P).
    N = 2               # batch
    INPUT_CHANNELS = 4  # fine-grained feature channels
    NUM_CLASSES = 4     # coarse prediction channels / output classes
    P = 16              # number of sampled points

    key = jax.random.PRNGKey(0)
    k_fine, k_coarse, k_params, k_bias = jax.random.split(key, 4)

    fine = jax.random.normal(k_fine, (N, INPUT_CHANNELS, P), jnp.float32)
    coarse = jax.random.normal(k_coarse, (N, NUM_CLASSES, P), jnp.float32)
    params = init_params(k_params, INPUT_CHANNELS, NUM_CLASSES)

    # The module initializes biases to 0; perturb them here so the
    # bias-folding path is actually exercised by the self-test.
    kb = jax.random.split(k_bias, 4)
    for i, name in enumerate(("b1", "b2", "b3", "bp")):
        params[name] = 0.05 * jax.random.normal(kb[i], params[name].shape, jnp.float32)

    out = point_head_forward(fine, coarse, params)
    out = jax.block_until_ready(out)

    ref = point_head_reference(fine, coarse, params)
    assert out.shape == (N, NUM_CLASSES, P), out.shape
    # bf16 weights/activations with f32 accumulation -> loose-ish tolerance.
    err = float(jnp.max(jnp.abs(out - ref)))
    assert jnp.allclose(out, ref, atol=2e-3, rtol=2e-2), (
        f"mismatch vs reference: max abs err = {err}")

    print("KERNEL_OK")
</pallas_src>

<mosaic_0001>
module attributes {stable_mosaic.version = 11 : i64} {
  func.func @point_head_kernel(%arg0: i32, %arg1: i32, %arg2: memref<1x4x16xf32, #tpu.memory_space<vmem>>, %arg3: memref<1x5x16xf32, #tpu.memory_space<vmem>>, %arg4: memref<256x4xbf16, #tpu.memory_space<vmem>>, %arg5: memref<256x5xbf16, #tpu.memory_space<vmem>>, %arg6: memref<256x256xbf16, #tpu.memory_space<vmem>>, %arg7: memref<256x5xbf16, #tpu.memory_space<vmem>>, %arg8: memref<256x256xbf16, #tpu.memory_space<vmem>>, %arg9: memref<256x5xbf16, #tpu.memory_space<vmem>>, %arg10: memref<4x256xbf16, #tpu.memory_space<vmem>>, %arg11: memref<4x5xbf16, #tpu.memory_space<vmem>>, %arg12: memref<1x4x16xf32, #tpu.memory_space<vmem>>) attributes {dimension_semantics = [#tpu.dimension_semantics<parallel>, #tpu.dimension_semantics<parallel>], iteration_bounds = array<i64: 2, 1>, scalar_prefetch = 0 : i64, scratch_operands = 0 : i64, tpu.core_type = #tpu.core_type<tc>, window_params = [{transform_indices = @transform_0, window_bounds = array<i64: 1, 4, 16>}, {transform_indices = @transform_1, window_bounds = array<i64: 1, 5, 16>}, {pipeline_mode = #tpu.pipeline_mode<synchronous>, transform_indices = @transform_2, window_bounds = array<i64: 256, 4>}, {pipeline_mode = #tpu.pipeline_mode<synchronous>, transform_indices = @transform_3, window_bounds = array<i64: 256, 5>}, {pipeline_mode = #tpu.pipeline_mode<synchronous>, transform_indices = @transform_4, window_bounds = array<i64: 256, 256>}, {pipeline_mode = #tpu.pipeline_mode<synchronous>, transform_indices = @transform_5, window_bounds = array<i64: 256, 5>}, {pipeline_mode = #tpu.pipeline_mode<synchronous>, transform_indices = @transform_6, window_bounds = array<i64: 256, 256>}, {pipeline_mode = #tpu.pipeline_mode<synchronous>, transform_indices = @transform_7, window_bounds = array<i64: 256, 5>}, {pipeline_mode = #tpu.pipeline_mode<synchronous>, transform_indices = @transform_8, window_bounds = array<i64: 4, 256>}, {pipeline_mode = #tpu.pipeline_mode<synchronous>, transform_indices = @transform_9, window_bounds = array<i64: 4, 5>}, {transform_indices = @transform_10, window_bounds = array<i64: 1, 4, 16>}]} {
    %c0 = arith.constant 0 : index
    %c0_0 = arith.constant 0 : index
    %c0_1 = arith.constant 0 : index
    %0 = vector.load %arg2[%c0, %c0_0, %c0_1] : memref<1x4x16xf32, #tpu.memory_space<vmem>>, vector<1x4x16xf32>
    %1 = vector.shape_cast %0 : vector<1x4x16xf32> to vector<4x16xf32>
    %2 = arith.truncf %1 : vector<4x16xf32> to vector<4x16xbf16>
    %c0_2 = arith.constant 0 : index
    %c0_3 = arith.constant 0 : index
    %c0_4 = arith.constant 0 : index
    %3 = vector.load %arg3[%c0_2, %c0_3, %c0_4] : memref<1x5x16xf32, #tpu.memory_space<vmem>>, vector<1x5x16xf32>
    %4 = vector.shape_cast %3 : vector<1x5x16xf32> to vector<5x16xf32>
    %5 = arith.truncf %4 : vector<5x16xf32> to vector<5x16xbf16>
    %c0_5 = arith.constant 0 : index
    %c0_6 = arith.constant 0 : index
    %6 = vector.load %arg4[%c0_5, %c0_6] : memref<256x4xbf16, #tpu.memory_space<vmem>>, vector<256x4xbf16>
    %cst = arith.constant dense<0.000000e+00> : vector<256x16xf32>
    %7 = tpu.matmul %6, %2, %cst {dimension_numbers = #tpu.dot_dimension_numbers<[1], [0], [0], [1], [0, 0, 1, 1], [], []>} : vector<256x4xbf16>, vector<4x16xbf16>, vector<256x16xf32> -> vector<256x16xf32>
    %c0_7 = arith.constant 0 : index
    %c0_8 = arith.constant 0 : index
    %8 = vector.load %arg5[%c0_7, %c0_8] : memref<256x5xbf16, #tpu.memory_space<vmem>>, vector<256x5xbf16>
    %cst_9 = arith.constant dense<0.000000e+00> : vector<256x16xf32>
    %9 = tpu.matmul %8, %5, %cst_9 {dimension_numbers = #tpu.dot_dimension_numbers<[1], [0], [0], [1], [0, 0, 1, 1], [], []>} : vector<256x5xbf16>, vector<5x16xbf16>, vector<256x16xf32> -> vector<256x16xf32>
    %10 = arith.addf %7, %9 : vector<256x16xf32>
    %cst_10 = arith.constant 0.000000e+00 : f32
    %11 = vector.broadcast %cst_10 : f32 to vector<256x16xf32>
    %12 = arith.maximumf %10, %11 : vector<256x16xf32>
    %13 = arith.truncf %12 : vector<256x16xf32> to vector<256x16xbf16>
    %c0_11 = arith.constant 0 : index
    %c0_12 = arith.constant 0 : index
    %14 = vector.load %arg6[%c0_11, %c0_12] : memref<256x256xbf16, #tpu.memory_space<vmem>>, vector<256x256xbf16>
    %cst_13 = arith.constant dense<0.000000e+00> : vector<256x16xf32>
    %15 = tpu.matmul %14, %13, %cst_13 {dimension_numbers = #tpu.dot_dimension_numbers<[1], [0], [0], [1], [0, 0, 1, 1], [], []>} : vector<256x256xbf16>, vector<256x16xbf16>, vector<256x16xf32> -> vector<256x16xf32>
    %c0_14 = arith.constant 0 : index
    %c0_15 = arith.constant 0 : index
    %16 = vector.load %arg7[%c0_14, %c0_15] : memref<256x5xbf16, #tpu.memory_space<vmem>>, vector<256x5xbf16>
    %cst_16 = arith.constant dense<0.000000e+00> : vector<256x16xf32>
    %17 = tpu.matmul %16, %5, %cst_16 {dimension_numbers = #tpu.dot_dimension_numbers<[1], [0], [0], [1], [0, 0, 1, 1], [], []>} : vector<256x5xbf16>, vector<5x16xbf16>, vector<256x16xf32> -> vector<256x16xf32>
    %18 = arith.addf %15, %17 : vector<256x16xf32>
    %cst_17 = arith.constant 0.000000e+00 : f32
    %19 = vector.broadcast %cst_17 : f32 to vector<256x16xf32>
    %20 = arith.maximumf %18, %19 : vector<256x16xf32>
    %21 = arith.truncf %20 : vector<256x16xf32> to vector<256x16xbf16>
    %c0_18 = arith.constant 0 : index
    %c0_19 = arith.constant 0 : index
    %22 = vector.load %arg8[%c0_18, %c0_19] : memref<256x256xbf16, #tpu.memory_space<vmem>>, vector<256x256xbf16>
    %cst_20 = arith.constant dense<0.000000e+00> : vector<256x16xf32>
    %23 = tpu.matmul %22, %21, %cst_20 {dimension_numbers = #tpu.dot_dimension_numbers<[1], [0], [0], [1], [0, 0, 1, 1], [], []>} : vector<256x256xbf16>, vector<256x16xbf16>, vector<256x16xf32> -> vector<256x16xf32>
    %c0_21 = arith.constant 0 : index
    %c0_22 = arith.constant 0 : index
    %24 = vector.load %arg9[%c0_21, %c0_22] : memref<256x5xbf16, #tpu.memory_space<vmem>>, vector<256x5xbf16>
    %cst_23 = arith.constant dense<0.000000e+00> : vector<256x16xf32>
    %25 = tpu.matmul %24, %5, %cst_23 {dimension_numbers = #tpu.dot_dimension_numbers<[1], [0], [0], [1], [0, 0, 1, 1], [], []>} : vector<256x5xbf16>, vector<5x16xbf16>, vector<256x16xf32> -> vector<256x16xf32>
    %26 = arith.addf %23, %25 : vector<256x16xf32>
    %cst_24 = arith.constant 0.000000e+00 : f32
    %27 = vector.broadcast %cst_24 : f32 to vector<256x16xf32>
    %28 = arith.maximumf %26, %27 : vector<256x16xf32>
    %29 = arith.truncf %28 : vector<256x16xf32> to vector<256x16xbf16>
    %c0_25 = arith.constant 0 : index
    %c0_26 = arith.constant 0 : index
    %30 = vector.load %arg10[%c0_25, %c0_26] : memref<4x256xbf16, #tpu.memory_space<vmem>>, vector<4x256xbf16>
    %cst_27 = arith.constant dense<0.000000e+00> : vector<4x16xf32>
    %31 = tpu.matmul %30, %29, %cst_27 {dimension_numbers = #tpu.dot_dimension_numbers<[1], [0], [0], [1], [0, 0, 1, 1], [], []>} : vector<4x256xbf16>, vector<256x16xbf16>, vector<4x16xf32> -> vector<4x16xf32>
    %c0_28 = arith.constant 0 : index
    %c0_29 = arith.constant 0 : index
    %32 = vector.load %arg11[%c0_28, %c0_29] : memref<4x5xbf16, #tpu.memory_space<vmem>>, vector<4x5xbf16>
    %cst_30 = arith.constant dense<0.000000e+00> : vector<4x16xf32>
    %33 = tpu.matmul %32, %5, %cst_30 {dimension_numbers = #tpu.dot_dimension_numbers<[1], [0], [0], [1], [0, 0, 1, 1], [], []>} : vector<4x5xbf16>, vector<5x16xbf16>, vector<4x16xf32> -> vector<4x16xf32>
    %34 = arith.addf %31, %33 : vector<4x16xf32>
    %c0_31 = arith.constant 0 : index
    %c0_32 = arith.constant 0 : index
    %c0_33 = arith.constant 0 : index
    %35 = vector.load %arg12[%c0_31, %c0_32, %c0_33] : memref<1x4x16xf32, #tpu.memory_space<vmem>>, vector<1x4x16xf32>
    %36 = vector.shape_cast %35 : vector<1x4x16xf32> to vector<4x16xf32>
    %37 = vector.shape_cast %34 : vector<4x16xf32> to vector<1x4x16xf32>
    tpu.vector_store %arg12[%c0_31, %c0_32, %c0_33], %37 {strides = array<i32>} : memref<1x4x16xf32, #tpu.memory_space<vmem>>, vector<1x4x16xf32>,
    return
  }
  func.func @transform_0(%arg0: i32, %arg1: i32) -> (i32, i32, i32) {
    %c0_i32 = arith.constant 0 : i32
    %c0_i32_0 = arith.constant 0 : i32
    return %arg0, %c0_i32, %arg1 : i32, i32, i32
  }
  func.func @transform_1(%arg0: i32, %arg1: i32) -> (i32, i32, i32) {
    %c0_i32 = arith.constant 0 : i32
    %c0_i32_0 = arith.constant 0 : i32
    return %arg0, %c0_i32, %arg1 : i32, i32, i32
  }
  func.func @transform_2(%arg0: i32, %arg1: i32) -> (i32, i32) {
    %c0_i32 = arith.constant 0 : i32
    %c0_i32_0 = arith.constant 0 : i32
    %c0_i32_1 = arith.constant 0 : i32
    return %c0_i32, %c0_i32_0 : i32, i32
  }
  func.func @transform_3(%arg0: i32, %arg1: i32) -> (i32, i32) {
    %c0_i32 = arith.constant 0 : i32
    %c0_i32_0 = arith.constant 0 : i32
    %c0_i32_1 = arith.constant 0 : i32
    return %c0_i32, %c0_i32_0 : i32, i32
  }
  func.func @transform_4(%arg0: i32, %arg1: i32) -> (i32, i32) {
    %c0_i32 = arith.constant 0 : i32
    %c0_i32_0 = arith.constant 0 : i32
    %c0_i32_1 = arith.constant 0 : i32
    return %c0_i32, %c0_i32_0 : i32, i32
  }
  func.func @transform_5(%arg0: i32, %arg1: i32) -> (i32, i32) {
    %c0_i32 = arith.constant 0 : i32
    %c0_i32_0 = arith.constant 0 : i32
    %c0_i32_1 = arith.constant 0 : i32
    return %c0_i32, %c0_i32_0 : i32, i32
  }
  func.func @transform_6(%arg0: i32, %arg1: i32) -> (i32, i32) {
    %c0_i32 = arith.constant 0 : i32
    %c0_i32_0 = arith.constant 0 : i32
    %c0_i32_1 = arith.constant 0 : i32
    return %c0_i32, %c0_i32_0 : i32, i32
  }
  func.func @transform_7(%arg0: i32, %arg1: i32) -> (i32, i32) {
    %c0_i32 = arith.constant 0 : i32
    %c0_i32_0 = arith.constant 0 : i32
    %c0_i32_1 = arith.constant 0 : i32
    return %c0_i32, %c0_i32_0 : i32, i32
  }
  func.func @transform_8(%arg0: i32, %arg1: i32) -> (i32, i32) {
    %c0_i32 = arith.constant 0 : i32
    %c0_i32_0 = arith.constant 0 : i32
    %c0_i32_1 = arith.constant 0 : i32
    return %c0_i32, %c0_i32_0 : i32, i32
  }
  func.func @transform_9(%arg0: i32, %arg1: i32) -> (i32, i32) {
    %c0_i32 = arith.constant 0 : i32
    %c0_i32_0 = arith.constant 0 : i32
    %c0_i32_1 = arith.constant 0 : i32
    return %c0_i32, %c0_i32_0 : i32, i32
  }
  func.func @transform_10(%arg0: i32, %arg1: i32) -> (i32, i32, i32) {
    %c0_i32 = arith.constant 0 : i32
    %c0_i32_0 = arith.constant 0 : i32
    return %arg0, %c0_i32, %arg1 : i32, i32, i32
  }
}

</mosaic_0001>

<llo_original>
// kernel: tpu_custom_call.1
$region0: #{tpu_custom_call.1}
  #allocation0 [shape = 'u32[]', space=smem, size = 0x4, offset = 0x4, fixed_abs, tag = 'smem constant byte address 0x4 - core index']
  #allocation1 [shape = 'u32[72,128]{1,0:T(1,128)}', space=vmem, size = 0x9000, scoped, tag = 'internal scratch']
  %s0 = inlined_call_operand.vmem [shape: f32[2,4,16], index: 0, kind: input, shape index: {}]
  %s1 = inlined_call_operand.vmem [shape: f32[2,5,16], index: 1, kind: input, shape index: {}]
  %s2 = inlined_call_operand.vmem [shape: bf16[256,4], index: 2, kind: input, shape index: {}]
  %s3 = inlined_call_operand.vmem [shape: bf16[256,5], index: 3, kind: input, shape index: {}]
  %s4 = inlined_call_operand.vmem [shape: bf16[256,256], index: 4, kind: input, shape index: {}]
  %s5 = inlined_call_operand.vmem [shape: bf16[256,5], index: 5, kind: input, shape index: {}]
  %s6 = inlined_call_operand.hbm [shape: bf16[256,256], index: 6, kind: input, shape index: {}]
  %s7 = inlined_call_operand.vmem [shape: bf16[256,5], index: 7, kind: input, shape index: {}]
  %s8 = inlined_call_operand.vmem [shape: bf16[4,256], index: 8, kind: input, shape index: {}]
  %s9 = inlined_call_operand.vmem [shape: bf16[4,5], index: 9, kind: input, shape index: {}]
  %s10 = inlined_call_operand.hbm [shape: f32[2,4,16], index: 10, kind: output, shape index: {}]
  %s11 = sld [smem:[#allocation0]]
  $region77: #{tpu_custom_call.1} parent=0
    _
  %s13 = ssub.s32 1, %s11
  %s14 = scalar_select 0, %s13, %s11
  $region1: #{tpu_custom_call.1} parent=0
    #allocation2 [shape = 'u8[131072]{0}', space=vmem, size = 0x20000, scoped, tag = 'input window, operand 6, single buffered']
    #allocation3 [shape = 's32[2]{0}', space=sflag, size = 0x8, scoped, tag = 'scoped memory for tpu_custom_call.1']
    #allocation4 [shape = 's32[2]{0}', space=sflag, size = 0x8, scoped, tag = 'scoped memory for tpu_custom_call.1']
    #allocation5 [shape = 'u8[4096]{0}', space=vmem, size = 0x1000, scoped, tag = 'output window, operand 0']
    %15 = vsyncpa [#allocation3], 0
    %16 = vsyncpa [#allocation4], 0
    %s17 = scalar_lea.sflag [#allocation4], 1
    %18 = vsyncpa %s17, 0
    loop: start=0, step=1, limit=4
    $region2: #{tpu_custom_call.1} parent=1 // loop_pre_header
      _
    $region3: #{tpu_custom_call.1} parent=1 // loop_header
      %s20 = sphi 0, %s24
      %p21 = scmp.ge.s32.totalorder %s20, 4
      %s27 = sphi 0, %s39
      %s28 = sphi 0, %s35
      %s29 = sphi 0, %s27
      %s30 = sphi 0, %s28
      %s31 = sphi 0, %s29
      %s32 = sphi 0, %s30
      %s44 = sphi 0, %s46
      %s47 = sphi 0, %s44
      %s48 = sphi 0, %s47
      %s64 = sphi 0, %s48
      %s72 = sphi 0, %s74
      %s75 = sphi 0, %s72
      %s76 = sphi 0, %s75
      %s92 = sphi 0, %s76
      %s96 = sphi 0, %s96
      %s98 = sphi 0, %s96
      %s99 = sphi 0, %s98
      %s113 = sphi 0, %s99
      %s117 = sphi 0, %s117
      %s119 = sphi 0, %s117
      %s120 = sphi 0, %s119
      %s134 = sphi 0, %s120
      %s138 = sphi 0, %s138
      %s140 = sphi 0, %s138
      %s141 = sphi 0, %s140
      %s155 = sphi 0, %s141
      %s159 = sphi 0, %s159
      %s161 = sphi 0, %s159
      %s162 = sphi 0, %s161
      %s176 = sphi 0, %s162
      %s180 = sphi 0, %s180
      %s182 = sphi 0, %s180
      %s183 = sphi 0, %s182
      %s197 = sphi 0, %s183
      %s201 = sphi 0, %s201
      %s203 = sphi 0, %s201
      %s204 = sphi 0, %s203
      %s218 = sphi 0, %s204
      %s222 = sphi 0, %s222
      %s224 = sphi 0, %s222
      %s225 = sphi 0, %s224
      %s239 = sphi 0, %s225
      %s243 = sphi 0, %s243
      %s245 = sphi 0, %s243
      %s246 = sphi 0, %s245
      %s260 = sphi 0, %s246
      %s268 = sphi 0, %s270
      %s271 = sphi 0, %s268
      %s272 = sphi 0, %s271
      %s288 = sphi 0, %s272
    $region4: #{tpu_custom_call.1} parent=1 // loop_header_branch
      %23 = sbr.rel (%p21) target = $region8
    $region5: #{tpu_custom_call.1} parent=1 // loop_body
      %s25 = ssub.s32 %s20, 1
      %s26 = ssub.s32 %s20, 2
      %s33 = sadd.s32 1, %s28
      %p34 = scmp.ge.s32.totalorder %s33, 1
      %s35 = scalar_select %p34, 0, %s33
      %s36 = sadd.s32 1, %s27
      %s37 = scalar_select %p34, %s36, %s27
      %p38 = scmp.ge.s32.totalorder %s37, 2
      %s39 = scalar_select %p38, 0, %s37
      %s40 = ssub.s32 %s27, %s39
      %s41 = ssub.s32 %s28, %s35
      %s42 = sor.u32 %s40, %s41
      %p43 = scmp.eq.s32.totalorder %s42, 0
      %s45 = sadd.s32 %s44, 1
      %s46 = scalar_select %p43, %s44, %s45
      %p49 = pneg %p43
      %p50 = scmp.eq.s32.totalorder %s20, 1
      %p51 = por %p49, %p50
      %p52 = scmp.ne.s32.totalorder %s44, %s47
      %p53 = scmp.eq.s32.totalorder %s20, 0
      %p54 = por %p52, %p53
      %p55 = scmp.ne.s32.totalorder %s44, %s47
      %p56 = scmp.eq.s32.totalorder %s25, 1
      %p57 = por %p55, %p56
      %p58 = scmp.ne.s32.totalorder %s47, %s48
      %p59 = scmp.eq.s32.totalorder %s25, 0
      %p60 = por %p58, %p59
      %p61 = scmp.ne.s32.totalorder %s47, %s48
      %p62 = scmp.eq.s32.totalorder %s26, 1
      %p63 = por %p61, %p62
      %p65 = scmp.ne.s32.totalorder %s48, %s64
      %p66 = scmp.eq.s32.totalorder %s26, 0
      %p67 = por %p65, %p66
      %s68 = ssub.s32 %s27, %s39
      %s69 = ssub.s32 %s28, %s35
      %s70 = sor.u32 %s68, %s69
      %p71 = scmp.eq.s32.totalorder %s70, 0
      %s73 = sadd.s32 %s72, 1
      %s74 = scalar_select %p71, %s72, %s73
      %p77 = pneg %p71
      %p78 = scmp.eq.s32.totalorder %s20, 1
      %p79 = por %p77, %p78
      %p80 = scmp.ne.s32.totalorder %s72, %s75
      %p81 = scmp.eq.s32.totalorder %s20, 0
      %p82 = por %p80, %p81
      %p83 = scmp.ne.s32.totalorder %s72, %s75
      %p84 = scmp.eq.s32.totalorder %s25, 1
      %p85 = por %p83, %p84
      %p86 = scmp.ne.s32.totalorder %s75, %s76
      %p87 = scmp.eq.s32.totalorder %s25, 0
      %p88 = por %p86, %p87
      %p89 = scmp.ne.s32.totalorder %s75, %s76
      %p90 = scmp.eq.s32.totalorder %s26, 1
      %p91 = por %p89, %p90
      %p93 = scmp.ne.s32.totalorder %s76, %s92
      %p94 = scmp.eq.s32.totalorder %s26, 0
      %p95 = por %p93, %p94
      %s97 = sadd.s32 %s96, 1
      %p100 = scmp.eq.s32.totalorder %s20, 1
      %p101 = scmp.ne.s32.totalorder %s96, %s98
      %p102 = scmp.eq.s32.totalorder %s20, 0
      %p103 = por %p101, %p102
      %p104 = scmp.ne.s32.totalorder %s96, %s98
      %p105 = scmp.eq.s32.totalorder %s25, 1
      %p106 = por %p104, %p105
      %p107 = scmp.ne.s32.totalorder %s98, %s99
      %p108 = scmp.eq.s32.totalorder %s25, 0
      %p109 = por %p107, %p108
      %p110 = scmp.ne.s32.totalorder %s98, %s99
      %p111 = scmp.eq.s32.totalorder %s26, 1
      %p112 = por %p110, %p111
      %p114 = scmp.ne.s32.totalorder %s99, %s113
      %p115 = scmp.eq.s32.totalorder %s26, 0
      %p116 = por %p114, %p115
      %s118 = sadd.s32 %s117, 1
      %p121 = scmp.eq.s32.totalorder %s20, 1
      %p122 = scmp.ne.s32.totalorder %s117, %s119
      %p123 = scmp.eq.s32.totalorder %s20, 0
      %p124 = por %p122, %p123
      %p125 = scmp.ne.s32.totalorder %s117, %s119
      %p126 = scmp.eq.s32.totalorder %s25, 1
      %p127 = por %p125, %p126
      %p128 = scmp.ne.s32.totalorder %s119, %s120
      %p129 = scmp.eq.s32.totalorder %s25, 0
      %p130 = por %p128, %p129
      %p131 = scmp.ne.s32.totalorder %s119, %s120
      %p132 = scmp.eq.s32.totalorder %s26, 1
      %p133 = por %p131, %p132
      %p135 = scmp.ne.s32.totalorder %s120, %s134
      %p136 = scmp.eq.s32.totalorder %s26, 0
      %p137 = por %p135, %p136
      %s139 = sadd.s32 %s138, 1
      %p142 = scmp.eq.s32.totalorder %s20, 1
      %p143 = scmp.ne.s32.totalorder %s138, %s140
      %p144 = scmp.eq.s32.totalorder %s20, 0
      %p145 = por %p143, %p144
      %p146 = scmp.ne.s32.totalorder %s138, %s140
      %p147 = scmp.eq.s32.totalorder %s25, 1
      %p148 = por %p146, %p147
      %p149 = scmp.ne.s32.totalorder %s140, %s141
      %p150 = scmp.eq.s32.totalorder %s25, 0
      %p151 = por %p149, %p150
      %p152 = scmp.ne.s32.totalorder %s140, %s141
      %p153 = scmp.eq.s32.totalorder %s26, 1
      %p154 = por %p152, %p153
      %p156 = scmp.ne.s32.totalorder %s141, %s155
      %p157 = scmp.eq.s32.totalorder %s26, 0
      %p158 = por %p156, %p157
      %s160 = sadd.s32 %s159, 1
      %p163 = scmp.eq.s32.totalorder %s20, 1
      %p164 = scmp.ne.s32.totalorder %s159, %s161
      %p165 = scmp.eq.s32.totalorder %s20, 0
      %p166 = por %p164, %p165
      %p167 = scmp.ne.s32.totalorder %s159, %s161
      %p168 = scmp.eq.s32.totalorder %s25, 1
      %p169 = por %p167, %p168
      %p170 = scmp.ne.s32.totalorder %s161, %s162
      %p171 = scmp.eq.s32.totalorder %s25, 0
      %p172 = por %p170, %p171
      %p173 = scmp.ne.s32.totalorder %s161, %s162
      %p174 = scmp.eq.s32.totalorder %s26, 1
      %p175 = por %p173, %p174
      %p177 = scmp.ne.s32.totalorder %s162, %s176
      %p178 = scmp.eq.s32.totalorder %s26, 0
      %p179 = por %p177, %p178
      %s181 = sadd.s32 %s180, 1
      %p184 = scmp.eq.s32.totalorder %s20, 1
      %p185 = scmp.ne.s32.totalorder %s180, %s182
      %p186 = scmp.eq.s32.totalorder %s20, 0
      %p187 = por %p185, %p186
      %p188 = scmp.ne.s32.totalorder %s180, %s182
      %p189 = scmp.eq.s32.totalorder %s25, 1
      %p190 = por %p188, %p189
      %p191 = scmp.ne.s32.totalorder %s182, %s183
      %p192 = scmp.eq.s32.totalorder %s25, 0
      %p193 = por %p191, %p192
      %p194 = scmp.ne.s32.totalorder %s182, %s183
      %p195 = scmp.eq.s32.totalorder %s26, 1
      %p196 = por %p194, %p195
      %p198 = scmp.ne.s32.totalorder %s183, %s197
      %p199 = scmp.eq.s32.totalorder %s26, 0
      %p200 = por %p198, %p199
      %s202 = sadd.s32 %s201, 1
      %p205 = scmp.eq.s32.totalorder %s20, 1
      %p206 = scmp.ne.s32.totalorder %s201, %s203
      %p207 = scmp.eq.s32.totalorder %s20, 0
      %p208 = por %p206, %p207
      %p209 = scmp.ne.s32.totalorder %s201, %s203
      %p210 = scmp.eq.s32.totalorder %s25, 1
      %p211 = por %p209, %p210
      %p212 = scmp.ne.s32.totalorder %s203, %s204
      %p213 = scmp.eq.s32.totalorder %s25, 0
      %p214 = por %p212, %p213
      %p215 = scmp.ne.s32.totalorder %s203, %s204
      %p216 = scmp.eq.s32.totalorder %s26, 1
      %p217 = por %p215, %p216
      %p219 = scmp.ne.s32.totalorder %s204, %s218
      %p220 = scmp.eq.s32.totalorder %s26, 0
      %p221 = por %p219, %p220
      %s223 = sadd.s32 %s222, 1
      %p226 = scmp.eq.s32.totalorder %s20, 1
      %p227 = scmp.ne.s32.totalorder %s222, %s224
      %p228 = scmp.eq.s32.totalorder %s20, 0
      %p229 = por %p227, %p228
      %p230 = scmp.ne.s32.totalorder %s222, %s224
      %p231 = scmp.eq.s32.totalorder %s25, 1
      %p232 = por %p230, %p231
      %p233 = scmp.ne.s32.totalorder %s224, %s225
      %p234 = scmp.eq.s32.totalorder %s25, 0
      %p235 = por %p233, %p234
      %p236 = scmp.ne.s32.totalorder %s224, %s225
      %p237 = scmp.eq.s32.totalorder %s26, 1
      %p238 = por %p236, %p237
      %p240 = scmp.ne.s32.totalorder %s225, %s239
      %p241 = scmp.eq.s32.totalorder %s26, 0
      %p242 = por %p240, %p241
      %s244 = sadd.s32 %s243, 1
      %p247 = scmp.eq.s32.totalorder %s20, 1
      %p248 = scmp.ne.s32.totalorder %s243, %s245
      %p249 = scmp.eq.s32.totalorder %s20, 0
      %p250 = por %p248, %p249
      %p251 = scmp.ne.s32.totalorder %s243, %s245
      %p252 = scmp.eq.s32.totalorder %s25, 1
      %p253 = por %p251, %p252
      %p254 = scmp.ne.s32.totalorder %s245, %s246
      %p255 = scmp.eq.s32.totalorder %s25, 0
      %p256 = por %p254, %p255
      %p257 = scmp.ne.s32.totalorder %s245, %s246
      %p258 = scmp.eq.s32.totalorder %s26, 1
      %p259 = por %p257, %p258
      %p261 = scmp.ne.s32.totalorder %s246, %s260
      %p262 = scmp.eq.s32.totalorder %s26, 0
      %p263 = por %p261, %p262
      %s264 = ssub.s32 %s27, %s39
      %s265 = ssub.s32 %s28, %s35
      %s266 = sor.u32 %s264, %s265
      %p267 = scmp.eq.s32.totalorder %s266, 0
      %s269 = sadd.s32 %s268, 1
      %s270 = scalar_select %p267, %s268, %s269
      %p273 = pneg %p267
      %p274 = scmp.eq.s32.totalorder %s20, 1
      %p275 = por %p273, %p274
      %p276 = scmp.ne.s32.totalorder %s268, %s271
      %p277 = scmp.eq.s32.totalorder %s20, 0
      %p278 = por %p276, %p277
      %p279 = scmp.ne.s32.totalorder %s268, %s271
      %p280 = scmp.eq.s32.totalorder %s25, 1
      %p281 = por %p279, %p280
      %p282 = scmp.ne.s32.totalorder %s271, %s272
      %p283 = scmp.eq.s32.totalorder %s25, 0
      %p284 = por %p282, %p283
      %p285 = scmp.ne.s32.totalorder %s271, %s272
      %p286 = scmp.eq.s32.totalorder %s26, 1
      %p287 = por %p285, %p286
      %p289 = scmp.ne.s32.totalorder %s272, %s288
      %p290 = scmp.eq.s32.totalorder %s26, 0
      %p291 = por %p289, %p290
      %p292 = scmp.le.s32.totalorder 1, %s20
      %p293 = scmp.lt.s32.totalorder %s20, 3
      %p294 = pnand %p292, %p293
      %p295 = pneg %p294
      // Predicated region
      $region9: #{tpu_custom_call.1} parent=5 // pred_check
        _
      $region10: #{tpu_custom_call.1} parent=5 // pred_check_branch
        %297 = sbr.rel (%p294) target = $region12
      $region11: #{tpu_custom_call.1} parent=5 // pred_region
        %s298 = ssub.s32 %s20, 1
        // Predicated region
        $region13: #{tpu_custom_call.1} parent=11 // pred_check
          %p299 = pneg %p109
        $region14: #{tpu_custom_call.1} parent=11 // pred_check_branch
          %301 = sbr.rel (%p299) target = $region16
        $region15: #{tpu_custom_call.1} parent=11 // pred_region
          _
        $region16: #{tpu_custom_call.1} parent=11 // pred_fallthru
          _
        // Predicated region
        $region17: #{tpu_custom_call.1} parent=11 // pred_check
          %p302 = pneg %p130
        $region18: #{tpu_custom_call.1} parent=11 // pred_check_branch
          %304 = sbr.rel (%p302) target = $region20
        $region19: #{tpu_custom_call.1} parent=11 // pred_region
          _
        $region20: #{tpu_custom_call.1} parent=11 // pred_fallthru
          _
        // Predicated region
        $region21: #{tpu_custom_call.1} parent=11 // pred_check
          %p305 = pneg %p151
        $region22: #{tpu_custom_call.1} parent=11 // pred_check_branch
          %307 = sbr.rel (%p305) target = $region24
        $region23: #{tpu_custom_call.1} parent=11 // pred_region
          _
        $region24: #{tpu_custom_call.1} parent=11 // pred_fallthru
          _
        // Predicated region
        $region25: #{tpu_custom_call.1} parent=11 // pred_check
          %p308 = pneg %p172
        $region26: #{tpu_custom_call.1} parent=11 // pred_check_branch
          %310 = sbr.rel (%p308) target = $region28
        $region27: #{tpu_custom_call.1} parent=11 // pred_region
          _
        $region28: #{tpu_custom_call.1} parent=11 // pred_fallthru
          _
        // Predicated region
        $region29: #{tpu_custom_call.1} parent=11 // pred_check
          %p311 = pneg %p193
        $region30: #{tpu_custom_call.1} parent=11 // pred_check_branch
          %313 = sbr.rel (%p311) target = $region32
        $region31: #{tpu_custom_call.1} parent=11 // pred_region
          %315 = vsyncadd [#allocation3], 0
          %s316 = sshll.u32 %s6, 4
          %s317 = int_to_ptr.hbm [resolvable:$true] %s316
          %s318 = sshll.u32 [#allocation2], 4
          %s319 = int_to_ptr.vmem [resolvable:$true] %s318
          %324 = dma.hbm_to_vmem [thread:$0]  %s317, 4096, %s319, [#allocation3], 128, 128, 8
        $region32: #{tpu_custom_call.1} parent=11 // pred_fallthru
          _
        // Predicated region
        $region33: #{tpu_custom_call.1} parent=11 // pred_check
          %p325 = pneg %p214
        $region34: #{tpu_custom_call.1} parent=11 // pred_check_branch
          %327 = sbr.rel (%p325) target = $region36
        $region35: #{tpu_custom_call.1} parent=11 // pred_region
          _
        $region36: #{tpu_custom_call.1} parent=11 // pred_fallthru
          _
        // Predicated region
        $region37: #{tpu_custom_call.1} parent=11 // pred_check
          %p328 = pneg %p235
        $region38: #{tpu_custom_call.1} parent=11 // pred_check_branch
          %330 = sbr.rel (%p328) target = $region40
        $region39: #{tpu_custom_call.1} parent=11 // pred_region
          _
        $region40: #{tpu_custom_call.1} parent=11 // pred_fallthru
          _
        // Predicated region
        $region41: #{tpu_custom_call.1} parent=11 // pred_check
          %p331 = pneg %p256
        $region42: #{tpu_custom_call.1} parent=11 // pred_check_branch
          %333 = sbr.rel (%p331) target = $region44
        $region43: #{tpu_custom_call.1} parent=11 // pred_region
          _
        $region44: #{tpu_custom_call.1} parent=11 // pred_fallthru
          _
      $region12: #{tpu_custom_call.1} parent=5 // pred_fallthru
        _
      %p334 = scmp.lt.s32.totalorder %s20, 2
      // Predicated region
      $region45: #{tpu_custom_call.1} parent=5 // pred_check
        %p335 = pneg %p334
      $region46: #{tpu_custom_call.1} parent=5 // pred_check_branch
        %337 = sbr.rel (%p335) target = $region48
      $region47: #{tpu_custom_call.1} parent=5 // pred_region
        // Predicated region
        $region49: #{tpu_custom_call.1} parent=47 // pred_check
          %p338 = pneg %p54
        $region50: #{tpu_custom_call.1} parent=47 // pred_check_branch
          %340 = sbr.rel (%p338) target = $region52
        $region51: #{tpu_custom_call.1} parent=47 // pred_region
          %p341 = scmp.lt.s32.totalorder %s27, 1
          %s342 = scalar_select %p341, %s27, 1
          %p343 = scmp.lt.s32.totalorder %s28, 0
          %s344 = scalar_select %p343, %s28, 0
          %s345 = sadd.s32 %s344, %s342
          %s346 = smul.addr %s345, 4
          %s347 = scalar_lea.vmem %s0, %s346
        $region52: #{tpu_custom_call.1} parent=47 // pred_fallthru
          _
        // Predicated region
        $region53: #{tpu_custom_call.1} parent=47 // pred_check
          %p348 = pneg %p82
        $region54: #{tpu_custom_call.1} parent=47 // pred_check_branch
          %350 = sbr.rel (%p348) target = $region56
        $region55: #{tpu_custom_call.1} parent=47 // pred_region
          %p351 = scmp.lt.s32.totalorder %s27, 1
          %s352 = scalar_select %p351, %s27, 1
          %p353 = scmp.lt.s32.totalorder %s28, 0
          %s354 = scalar_select %p353, %s28, 0
          %s355 = sadd.s32 %s354, %s352
          %s356 = smul.addr %s355, 8
          %s357 = scalar_lea.vmem %s1, %s356
        $region56: #{tpu_custom_call.1} parent=47 // pred_fallthru
          _
      $region48: #{tpu_custom_call.1} parent=5 // pred_fallthru
        _
      %p358 = scmp.le.s32.totalorder 1, %s20
      %p359 = scmp.lt.s32.totalorder %s20, 3
      %p360 = pnand %p358, %p359
      %p361 = pneg %p360
      // Predicated region
      $region57: #{tpu_custom_call.1} parent=5 // pred_check
        _
      $region58: #{tpu_custom_call.1} parent=5 // pred_check_branch
        %363 = sbr.rel (%p360) target = $region60
      $region59: #{tpu_custom_call.1} parent=5 // pred_region
        %s364 = ssub.s32 %s20, 1
        // Predicated region
        $region61: #{tpu_custom_call.1} parent=59 // pred_check
          %p365 = pneg %p193
        $region62: #{tpu_custom_call.1} parent=59 // pred_check_branch
          %367 = sbr.rel (%p365) target = $region64
        $region63: #{tpu_custom_call.1} parent=59 // pred_region
          %369 = dma.done [#allocation3], 4096
        $region64: #{tpu_custom_call.1} parent=59 // pred_fallthru
          _
        %p370 = scmp.lt.s32.totalorder %s29, 1
        %s371 = scalar_select %p370, %s29, 1
        %p372 = scmp.lt.s32.totalorder %s30, 0
        %s373 = scalar_select %p372, %s30, 0
        %s374 = sadd.s32 %s373, %s371
        %s375 = smul.addr %s374, 4
        %s376 = scalar_lea.vmem %s0, %s375
        %p377 = pneg %p60
        %p378 = pneg %p57
        %p379 = scmp.lt.s32.totalorder %s29, 1
        %s380 = scalar_select %p379, %s29, 1
        %p381 = scmp.lt.s32.totalorder %s30, 0
        %s382 = scalar_select %p381, %s30, 0
        %s383 = sadd.s32 %s382, %s380
        %s384 = smul.addr %s383, 8
        %s385 = scalar_lea.vmem %s1, %s384
        %p386 = pneg %p88
        %p387 = pneg %p85
        %p388 = pneg %p109
        %p389 = pneg %p106
        %p390 = pneg %p130
        %p391 = pneg %p127
        %p392 = pneg %p151
        %p393 = pneg %p148
        %p394 = pneg %p172
        %p395 = pneg %p169
        %p396 = pneg %p193
        %p397 = pneg %p190
        %p398 = pneg %p214
        %p399 = pneg %p211
        %p400 = pneg %p235
        %p401 = pneg %p232
        %p402 = pneg %p256
        %p403 = pneg %p253
        %p404 = pneg %p284
        %p405 = pneg %p281
        %s406 = sand.u32 %s271, 1
        %s407 = scalar_lea.sflag [#allocation4], %s406
        %s408 = sand.u32 %s271, 1
        %s409 = smul.addr %s408, 4
        %s410 = scalar_lea.vmem [#allocation5], %s409
        %p411 = scmp.lt.s32.totalorder %s29, 1
        %s412 = scalar_select %p411, %s29, 1
        %p413 = scmp.lt.s32.totalorder %s30, 0
        %s414 = scalar_select %p413, %s30, 0
        %s415 = sadd.s32 %s414, %s412
        %s416 = smul.addr %s415, 4
        %s417 = scalar_lea.vmem %s0, %s416
        %p418 = scmp.lt.s32.totalorder %s29, 1
        %s419 = scalar_select %p418, %s29, 1
        %p420 = scmp.lt.s32.totalorder %s30, 0
        %s421 = scalar_select %p420, %s30, 0
        %s422 = sadd.s32 %s421, %s419
        %s423 = smul.addr %s422, 8
        %s424 = scalar_lea.vmem %s1, %s423
        %v426 = vld [vmem:[%s417] sm:$0xf]
        %v427 = vpack.c.bf16 %v426, %v426
        %v428 = vld [vmem:[%s424] sm:$0x1f]
        %v429 = vpack.c.bf16 %v428, %v428
        %v430 = vld [vmem:[%s2] sm:$0xf]
        %v431 = vld [vmem:[%s2 + $0x4] sm:$0xf]
        %v432 = vld [vmem:[%s2 + $0x8] sm:$0xf]
        %v433 = vld [vmem:[%s2 + $0xc] sm:$0xf]
        %v434 = vld [vmem:[%s2 + $0x10] sm:$0xf]
        %v435 = vld [vmem:[%s2 + $0x14] sm:$0xf]
        %v436 = vld [vmem:[%s2 + $0x18] sm:$0xf]
        %v437 = vld [vmem:[%s2 + $0x1c] sm:$0xf]
        %v438 = vld [vmem:[%s2 + $0x20] sm:$0xf]
        %v439 = vld [vmem:[%s2 + $0x24] sm:$0xf]
        %v440 = vld [vmem:[%s2 + $0x28] sm:$0xf]
        %v441 = vld [vmem:[%s2 + $0x2c] sm:$0xf]
        %v442 = vld [vmem:[%s2 + $0x30] sm:$0xf]
        %v443 = vld [vmem:[%s2 + $0x34] sm:$0xf]
        %v444 = vld [vmem:[%s2 + $0x38] sm:$0xf]
        %v445 = vld [vmem:[%s2 + $0x3c] sm:$0xf]
        %v446 = vld [vmem:[%s2 + $0x40] sm:$0xf]
        %v447 = vld [vmem:[%s2 + $0x44] sm:$0xf]
        %v448 = vld [vmem:[%s2 + $0x48] sm:$0xf]
        %v449 = vld [vmem:[%s2 + $0x4c] sm:$0xf]
        %v450 = vld [vmem:[%s2 + $0x50] sm:$0xf]
        %v451 = vld [vmem:[%s2 + $0x54] sm:$0xf]
        %v452 = vld [vmem:[%s2 + $0x58] sm:$0xf]
        %v453 = vld [vmem:[%s2 + $0x5c] sm:$0xf]
        %v454 = vld [vmem:[%s2 + $0x60] sm:$0xf]
        %v455 = vld [vmem:[%s2 + $0x64] sm:$0xf]
        %v456 = vld [vmem:[%s2 + $0x68] sm:$0xf]
        %v457 = vld [vmem:[%s2 + $0x6c] sm:$0xf]
        %v458 = vld [vmem:[%s2 + $0x70] sm:$0xf]
        %v459 = vld [vmem:[%s2 + $0x74] sm:$0xf]
        %v460 = vld [vmem:[%s2 + $0x78] sm:$0xf]
        %v461 = vld [vmem:[%s2 + $0x7c] sm:$0xf]
        %v462 = vld [vmem:[%s3] sm:$0xf]
        %v463 = vld [vmem:[%s3 + $0x4] sm:$0xf]
        %v464 = vld [vmem:[%s3 + $0x8] sm:$0xf]
        %v465 = vld [vmem:[%s3 + $0xc] sm:$0xf]
        %v466 = vld [vmem:[%s3 + $0x10] sm:$0xf]
        %v467 = vld [vmem:[%s3 + $0x14] sm:$0xf]
        %v468 = vld [vmem:[%s3 + $0x18] sm:$0xf]
        %v469 = vld [vmem:[%s3 + $0x1c] sm:$0xf]
        %v470 = vld [vmem:[%s3 + $0x20] sm:$0xf]
        %v471 = vld [vmem:[%s3 + $0x24] sm:$0xf]
        %v472 = vld [vmem:[%s3 + $0x28] sm:$0xf]
        %v473 = vld [vmem:[%s3 + $0x2c] sm:$0xf]
        %v474 = vld [vmem:[%s3 + $0x30] sm:$0xf]
        %v475 = vld [vmem:[%s3 + $0x34] sm:$0xf]
        %v476 = vld [vmem:[%s3 + $0x38] sm:$0xf]
        %v477 = vld [vmem:[%s3 + $0x3c] sm:$0xf]
        %v478 = vld [vmem:[%s3 + $0x40] sm:$0xf]
        %v479 = vld [vmem:[%s3 + $0x44] sm:$0xf]
        %v480 = vld [vmem:[%s3 + $0x48] sm:$0xf]
        %v481 = vld [vmem:[%s3 + $0x4c] sm:$0xf]
        %v482 = vld [vmem:[%s3 + $0x50] sm:$0xf]
        %v483 = vld [vmem:[%s3 + $0x54] sm:$0xf]
        %v484 = vld [vmem:[%s3 + $0x58] sm:$0xf]
        %v485 = vld [vmem:[%s3 + $0x5c] sm:$0xf]
        %v486 = vld [vmem:[%s3 + $0x60] sm:$0xf]
        %v487 = vld [vmem:[%s3 + $0x64] sm:$0xf]
        %v488 = vld [vmem:[%s3 + $0x68] sm:$0xf]
        %v489 = vld [vmem:[%s3 + $0x6c] sm:$0xf]
        %v490 = vld [vmem:[%s3 + $0x70] sm:$0xf]
        %v491 = vld [vmem:[%s3 + $0x74] sm:$0xf]
        %v492 = vld [vmem:[%s3 + $0x78] sm:$0xf]
        %v493 = vld [vmem:[%s3 + $0x7c] sm:$0xf]
        %v526 = vunpack.c.l.b16 %v462
        %v527 = vunpack.c.l.b16 %v463
        %v528 = vunpack.c.l.b16 %v464
        %v529 = vunpack.c.l.b16 %v465
        %v530 = vunpack.c.l.b16 %v466
        %v531 = vunpack.c.l.b16 %v467
        %v532 = vunpack.c.l.b16 %v468
        %v533 = vunpack.c.l.b16 %v469
        %v534 = vunpack.c.l.b16 %v470
        %v535 = vunpack.c.l.b16 %v471
        %v536 = vunpack.c.l.b16 %v472
        %v537 = vunpack.c.l.b16 %v473
        %v538 = vunpack.c.l.b16 %v474
        %v539 = vunpack.c.l.b16 %v475
        %v540 = vunpack.c.l.b16 %v476
        %v541 = vunpack.c.l.b16 %v477
        %v542 = vunpack.c.l.b16 %v478
        %v543 = vunpack.c.l.b16 %v479
        %v544 = vunpack.c.l.b16 %v480
        %v545 = vunpack.c.l.b16 %v481
        %v546 = vunpack.c.l.b16 %v482
        %v547 = vunpack.c.l.b16 %v483
        %v548 = vunpack.c.l.b16 %v484
        %v549 = vunpack.c.l.b16 %v485
        %v550 = vunpack.c.l.b16 %v486
        %v551 = vunpack.c.l.b16 %v487
        %v552 = vunpack.c.l.b16 %v488
        %v553 = vunpack.c.l.b16 %v489
        %v554 = vunpack.c.l.b16 %v490
        %v555 = vunpack.c.l.b16 %v491
        %v556 = vunpack.c.l.b16 %v492
        %v557 = vunpack.c.l.b16 %v493
        %v558 = vpack.c.b16 %v527, %v526
        %v559 = vpack.c.b16 %v529, %v528
        %v560 = vpack.c.b16 %v531, %v530
        %v561 = vpack.c.b16 %v533, %v532
        %v562 = vpack.c.b16 %v535, %v534
        %v563 = vpack.c.b16 %v537, %v536
        %v564 = vpack.c.b16 %v539, %v538
        %v565 = vpack.c.b16 %v541, %v540
        %v566 = vpack.c.b16 %v543, %v542
        %v567 = vpack.c.b16 %v545, %v544
        %v568 = vpack.c.b16 %v547, %v546
        %v569 = vpack.c.b16 %v549, %v548
        %v570 = vpack.c.b16 %v551, %v550
        %v571 = vpack.c.b16 %v553, %v552
        %v572 = vpack.c.b16 %v555, %v554
        %v573 = vpack.c.b16 %v557, %v556
        %vm574 = vcmask 39936
        %v576 = vsel %vm574, %v558, 0
        %v579 = vsel %vm574, %v559, 0
        %v582 = vsel %vm574, %v560, 0
        %v585 = vsel %vm574, %v561, 0
        %v588 = vsel %vm574, %v562, 0
        %v591 = vsel %vm574, %v563, 0
        %v594 = vsel %vm574, %v564, 0
        %v597 = vsel %vm574, %v565, 0
        %v600 = vsel %vm574, %v566, 0
        %v603 = vsel %vm574, %v567, 0
        %v606 = vsel %vm574, %v568, 0
        %v609 = vsel %vm574, %v569, 0
        %v612 = vsel %vm574, %v570, 0
        %v615 = vsel %vm574, %v571, 0
        %v618 = vsel %vm574, %v572, 0
        %v621 = vsel %vm574, %v573, 0
        %vm623 = vcmask 1041408
        %vm624 = vcmask 1042432
        %v625 = vsel %vm623, 4294967295, 65535
        %v626 = vsel %vm624, %v625, 0
        %v628 = vand.u32 %v429, %v626
        %630 = vmatpush.bf16.msra.mxu0 0
        %631 = vmatpush.bf16.msra.mxu0 0
        %632 = vmatpush.bf16.msra.mxu0 0
        %633 = vmatpush.bf16.msra.mxu0 0
        %634 = vmatpush.bf16.msra.mxu0 0
        %635 = vmatpush.bf16.msra.mxu0 0
        %636 = vmatpush.bf16.msra.mxu0 0
        %637 = vmatpush.bf16.msra.mxu0 %v628
        %638 = vmatmul.bf16.gmra.mxu0 %v576
        %v639 = vpop.f32.mrf.mxu0
        %v640 = vadd.f32 0.0, %v639
        %v641 = vpop.f32.mrf.mxu0
        %v642 = vadd.f32 0.0, %v641
        %643 = vmatmul.bf16.gmra.mxu0 %v579
        %v644 = vpop.f32.mrf.mxu0
        %v645 = vadd.f32 0.0, %v644
        %v646 = vpop.f32.mrf.mxu0
        %v647 = vadd.f32 0.0, %v646
        %648 = vmatmul.bf16.gmra.mxu0 %v582
        %v649 = vpop.f32.mrf.mxu0
        %v650 = vadd.f32 0.0, %v649
        %v651 = vpop.f32.mrf.mxu0
        %v652 = vadd.f32 0.0, %v651
        %653 = vmatmul.bf16.gmra.mxu0 %v585
        %v654 = vpop.f32.mrf.mxu0
        %v655 = vadd.f32 0.0, %v654
        %v656 = vpop.f32.mrf.mxu0
        %v657 = vadd.f32 0.0, %v656
        %658 = vmatmul.bf16.gmra.mxu0 %v588
        %v659 = vpop.f32.mrf.mxu0
        %v660 = vadd.f32 0.0, %v659
        %v661 = vpop.f32.mrf.mxu0
        %v662 = vadd.f32 0.0, %v661
        %663 = vmatmul.bf16.gmra.mxu0 %v591
        %v664 = vpop.f32.mrf.mxu0
        %v665 = vadd.f32 0.0, %v664
        %v666 = vpop.f32.mrf.mxu0
        %v667 = vadd.f32 0.0, %v666
        %668 = vmatmul.bf16.gmra.mxu0 %v594
        %v669 = vpop.f32.mrf.mxu0
        %v670 = vadd.f32 0.0, %v669
        %v671 = vpop.f32.mrf.mxu0
        %v672 = vadd.f32 0.0, %v671
        %673 = vmatmul.bf16.gmra.mxu0 %v597
        %v674 = vpop.f32.mrf.mxu0
        %v675 = vadd.f32 0.0, %v674
        %v676 = vpop.f32.mrf.mxu0
        %v677 = vadd.f32 0.0, %v676
        %678 = vmatmul.bf16.gmra.mxu0 %v600
        %v679 = vpop.f32.mrf.mxu0
        %v680 = vadd.f32 0.0, %v679
        %v681 = vpop.f32.mrf.mxu0
        %v682 = vadd.f32 0.0, %v681
        %683 = vmatmul.bf16.gmra.mxu0 %v603
        %v684 = vpop.f32.mrf.mxu0
        %v685 = vadd.f32 0.0, %v684
        %v686 = vpop.f32.mrf.mxu0
        %v687 = vadd.f32 0.0, %v686
        %688 = vmatmul.bf16.gmra.mxu0 %v606
        %v689 = vpop.f32.mrf.mxu0
        %v690 = vadd.f32 0.0, %v689
        %v691 = vpop.f32.mrf.mxu0
        %v692 = vadd.f32 0.0, %v691
        %693 = vmatmul.bf16.gmra.mxu0 %v609
        %v694 = vpop.f32.mrf.mxu0
        %v695 = vadd.f32 0.0, %v694
        %v696 = vpop.f32.mrf.mxu0
        %v697 = vadd.f32 0.0, %v696
        %698 = vmatmul.bf16.gmra.mxu0 %v612
        %v699 = vpop.f32.mrf.mxu0
        %v700 = vadd.f32 0.0, %v699
        %v701 = vpop.f32.mrf.mxu0
        %v702 = vadd.f32 0.0, %v701
        %703 = vmatmul.bf16.gmra.mxu0 %v615
        %v704 = vpop.f32.mrf.mxu0
        %v705 = vadd.f32 0.0, %v704
        %v706 = vpop.f32.mrf.mxu0
        %v707 = vadd.f32 0.0, %v706
        %708 = vmatmul.bf16.gmra.mxu0 %v618
        %v709 = vpop.f32.mrf.mxu0
        %v710 = vadd.f32 0.0, %v709
        %v711 = vpop.f32.mrf.mxu0
        %v712 = vadd.f32 0.0, %v711
        %713 = vmatmul.bf16.gmra.mxu0 %v621
        %v714 = vpop.f32.mrf.mxu0
        %v715 = vadd.f32 0.0, %v714
        %v716 = vpop.f32.mrf.mxu0
        %v717 = vadd.f32 0.0, %v716
        %718 = vdwg.mxu0
        %v751 = vunpack.c.l.b16 %v430
        %v752 = vunpack.c.l.b16 %v431
        %v753 = vunpack.c.l.b16 %v432
        %v754 = vunpack.c.l.b16 %v433
        %v755 = vunpack.c.l.b16 %v434
        %v756 = vunpack.c.l.b16 %v435
        %v757 = vunpack.c.l.b16 %v436
        %v758 = vunpack.c.l.b16 %v437
        %v759 = vunpack.c.l.b16 %v438
        %v760 = vunpack.c.l.b16 %v439
        %v761 = vunpack.c.l.b16 %v440
        %v762 = vunpack.c.l.b16 %v441
        %v763 = vunpack.c.l.b16 %v442
        %v764 = vunpack.c.l.b16 %v443
        %v765 = vunpack.c.l.b16 %v444
        %v766 = vunpack.c.l.b16 %v445
        %v767 = vunpack.c.l.b16 %v446
        %v768 = vunpack.c.l.b16 %v447
        %v769 = vunpack.c.l.b16 %v448
        %v770 = vunpack.c.l.b16 %v449
        %v771 = vunpack.c.l.b16 %v450
        %v772 = vunpack.c.l.b16 %v451
        %v773 = vunpack.c.l.b16 %v452
        %v774 = vunpack.c.l.b16 %v453
        %v775 = vunpack.c.l.b16 %v454
        %v776 = vunpack.c.l.b16 %v455
        %v777 = vunpack.c.l.b16 %v456
        %v778 = vunpack.c.l.b16 %v457
        %v779 = vunpack.c.l.b16 %v458
        %v780 = vunpack.c.l.b16 %v459
        %v781 = vunpack.c.l.b16 %v460
        %v782 = vunpack.c.l.b16 %v461
        %v783 = vpack.c.b16 %v752, %v751
        %v784 = vpack.c.b16 %v754, %v753
        %v785 = vpack.c.b16 %v756, %v755
        %v786 = vpack.c.b16 %v758, %v757
        %v787 = vpack.c.b16 %v760, %v759
        %v788 = vpack.c.b16 %v762, %v761
        %v789 = vpack.c.b16 %v764, %v763
        %v790 = vpack.c.b16 %v766, %v765
        %v791 = vpack.c.b16 %v768, %v767
        %v792 = vpack.c.b16 %v770, %v769
        %v793 = vpack.c.b16 %v772, %v771
        %v794 = vpack.c.b16 %v774, %v773
        %v795 = vpack.c.b16 %v776, %v775
        %v796 = vpack.c.b16 %v778, %v777
        %v797 = vpack.c.b16 %v780, %v779
        %v798 = vpack.c.b16 %v782, %v781
        %vm799 = vcmask 31744
        %v801 = vsel %vm799, %v783, 0
        %v804 = vsel %vm799, %v784, 0
        %v807 = vsel %vm799, %v785, 0
        %v810 = vsel %vm799, %v786, 0
        %v813 = vsel %vm799, %v787, 0
        %v816 = vsel %vm799, %v788, 0
        %v819 = vsel %vm799, %v789, 0
        %v822 = vsel %vm799, %v790, 0
        %v825 = vsel %vm799, %v791, 0
        %v828 = vsel %vm799, %v792, 0
        %v831 = vsel %vm799, %v793, 0
        %v834 = vsel %vm799, %v794, 0
        %v837 = vsel %vm799, %v795, 0
        %v840 = vsel %vm799, %v796, 0
        %v843 = vsel %vm799, %v797, 0
        %v846 = vsel %vm799, %v798, 0
        %v849 = vsel %vm623, %v427, 0
        %851 = vmatpush.bf16.msra.mxu0 0
        %852 = vmatpush.bf16.msra.mxu0 0
        %853 = vmatpush.bf16.msra.mxu0 0
        %854 = vmatpush.bf16.msra.mxu0 0
        %855 = vmatpush.bf16.msra.mxu0 0
        %856 = vmatpush.bf16.msra.mxu0 0
        %857 = vmatpush.bf16.msra.mxu0 0
        %858 = vmatpush.bf16.msra.mxu0 %v849
        %859 = vmatmul.bf16.gmra.mxu0 %v801
        %v860 = vpop.f32.mrf.mxu0
        %v861 = vadd.f32 %v640, %v860
        %v862 = vpop.f32.mrf.mxu0
        %v863 = vadd.f32 %v642, %v862
        %864 = vmatmul.bf16.gmra.mxu0 %v804
        %v865 = vpop.f32.mrf.mxu0
        %v866 = vadd.f32 %v645, %v865
        %v867 = vpop.f32.mrf.mxu0
        %v868 = vadd.f32 %v647, %v867
        %869 = vmatmul.bf16.gmra.mxu0 %v807
        %v870 = vpop.f32.mrf.mxu0
        %v871 = vadd.f32 %v650, %v870
        %v872 = vpop.f32.mrf.mxu0
        %v873 = vadd.f32 %v652, %v872
        %874 = vmatmul.bf16.gmra.mxu0 %v810
        %v875 = vpop.f32.mrf.mxu0
        %v876 = vadd.f32 %v655, %v875
        %v877 = vpop.f32.mrf.mxu0
        %v878 = vadd.f32 %v657, %v877
        %879 = vmatmul.bf16.gmra.mxu0 %v813
        %v880 = vpop.f32.mrf.mxu0
        %v881 = vadd.f32 %v660, %v880
        %v882 = vpop.f32.mrf.mxu0
        %v883 = vadd.f32 %v662, %v882
        %884 = vmatmul.bf16.gmra.mxu0 %v816
        %v885 = vpop.f32.mrf.mxu0
        %v886 = vadd.f32 %v665, %v885
        %v887 = vpop.f32.mrf.mxu0
        %v888 = vadd.f32 %v667, %v887
        %889 = vmatmul.bf16.gmra.mxu0 %v819
        %v890 = vpop.f32.mrf.mxu0
        %v891 = vadd.f32 %v670, %v890
        %v892 = vpop.f32.mrf.mxu0
        %v893 = vadd.f32 %v672, %v892
        %894 = vmatmul.bf16.gmra.mxu0 %v822
        %v895 = vpop.f32.mrf.mxu0
        %v896 = vadd.f32 %v675, %v895
        %v897 = vpop.f32.mrf.mxu0
        %v898 = vadd.f32 %v677, %v897
        %899 = vmatmul.bf16.gmra.mxu0 %v825
        %v900 = vpop.f32.mrf.mxu0
        %v901 = vadd.f32 %v680, %v900
        %v902 = vpop.f32.mrf.mxu0
        %v903 = vadd.f32 %v682, %v902
        %904 = vmatmul.bf16.gmra.mxu0 %v828
        %v905 = vpop.f32.mrf.mxu0
        %v906 = vadd.f32 %v685, %v905
        %v907 = vpop.f32.mrf.mxu0
        %v908 = vadd.f32 %v687, %v907
        %909 = vmatmul.bf16.gmra.mxu0 %v831
        %v910 = vpop.f32.mrf.mxu0
        %v911 = vadd.f32 %v690, %v910
        %v912 = vpop.f32.mrf.mxu0
        %v913 = vadd.f32 %v692, %v912
        %914 = vmatmul.bf16.gmra.mxu0 %v834
        %v915 = vpop.f32.mrf.mxu0
        %v916 = vadd.f32 %v695, %v915
        %v917 = vpop.f32.mrf.mxu0
        %v918 = vadd.f32 %v697, %v917
        %919 = vmatmul.bf16.gmra.mxu0 %v837
        %v920 = vpop.f32.mrf.mxu0
        %v921 = vadd.f32 %v700, %v920
        %v922 = vpop.f32.mrf.mxu0
        %v923 = vadd.f32 %v702, %v922
        %924 = vmatmul.bf16.gmra.mxu0 %v840
        %v925 = vpop.f32.mrf.mxu0
        %v926 = vadd.f32 %v705, %v925
        %v927 = vpop.f32.mrf.mxu0
        %v928 = vadd.f32 %v707, %v927
        %929 = vmatmul.bf16.gmra.mxu0 %v843
        %v930 = vpop.f32.mrf.mxu0
        %v931 = vadd.f32 %v710, %v930
        %v932 = vpop.f32.mrf.mxu0
        %v933 = vadd.f32 %v712, %v932
        %934 = vmatmul.bf16.gmra.mxu0 %v846
        %v935 = vpop.f32.mrf.mxu0
        %v936 = vadd.f32 %v715, %v935
        %v937 = vpop.f32.mrf.mxu0
        %v938 = vadd.f32 %v717, %v937
        %939 = vdwg.mxu0
        %v940 = vmax.f32 %v861, 0.0
        %v941 = vmax.f32 %v863, 0.0
        %v942 = vmax.f32 %v866, 0.0
        %v943 = vmax.f32 %v868, 0.0
        %v944 = vmax.f32 %v871, 0.0
        %v945 = vmax.f32 %v873, 0.0
        %v946 = vmax.f32 %v876, 0.0
        %v947 = vmax.f32 %v878, 0.0
        %v948 = vmax.f32 %v881, 0.0
        %v949 = vmax.f32 %v883, 0.0
        %v950 = vmax.f32 %v886, 0.0
        %v951 = vmax.f32 %v888, 0.0
        %v952 = vmax.f32 %v891, 0.0
        %v953 = vmax.f32 %v893, 0.0
        %v954 = vmax.f32 %v896, 0.0
        %v955 = vmax.f32 %v898, 0.0
        %v956 = vmax.f32 %v901, 0.0
        %v957 = vmax.f32 %v903, 0.0
        %v958 = vmax.f32 %v906, 0.0
        %v959 = vmax.f32 %v908, 0.0
        %v960 = vmax.f32 %v911, 0.0
        %v961 = vmax.f32 %v913, 0.0
        %v962 = vmax.f32 %v916, 0.0
        %v963 = vmax.f32 %v918, 0.0
        %v964 = vmax.f32 %v921, 0.0
        %v965 = vmax.f32 %v923, 0.0
        %v966 = vmax.f32 %v926, 0.0
        %v967 = vmax.f32 %v928, 0.0
        %v968 = vmax.f32 %v931, 0.0
        %v969 = vmax.f32 %v933, 0.0
        %v970 = vmax.f32 %v936, 0.0
        %v971 = vmax.f32 %v938, 0.0
        %v972 = vpack.c.bf16 %v941, %v940
        %v973 = vpack.c.bf16 %v943, %v942
        %v974 = vpack.c.bf16 %v945, %v944
        %v975 = vpack.c.bf16 %v947, %v946
        %v976 = vpack.c.bf16 %v949, %v948
        %v977 = vpack.c.bf16 %v951, %v950
        %v978 = vpack.c.bf16 %v953, %v952
        %v979 = vpack.c.bf16 %v955, %v954
        %v980 = vpack.c.bf16 %v957, %v956
        %v981 = vpack.c.bf16 %v959, %v958
        %v982 = vpack.c.bf16 %v961, %v960
        %v983 = vpack.c.bf16 %v963, %v962
        %v984 = vpack.c.bf16 %v965, %v964
        %v985 = vpack.c.bf16 %v967, %v966
        %v986 = vpack.c.bf16 %v969, %v968
        %v987 = vpack.c.bf16 %v971, %v970
        %v988 = vld [vmem:[%s4] sm:$0xff]
        %v989 = vld [vmem:[%s4 + $0x8] sm:$0xff]
        %v990 = vld [vmem:[%s4 + $0x10] sm:$0xff]
        %v991 = vld [vmem:[%s4 + $0x18] sm:$0xff]
        %v992 = vld [vmem:[%s4 + $0x20] sm:$0xff]
        %v993 = vld [vmem:[%s4 + $0x28] sm:$0xff]
        %v994 = vld [vmem:[%s4 + $0x30] sm:$0xff]
        %v995 = vld [vmem:[%s4 + $0x38] sm:$0xff]
        %v996 = vld [vmem:[%s4 + $0x40] sm:$0xff]
        %v997 = vld [vmem:[%s4 + $0x48] sm:$0xff]
        %v998 = vld [vmem:[%s4 + $0x50] sm:$0xff]
        %v999 = vld [vmem:[%s4 + $0x58] sm:$0xff]
        %v1000 = vld [vmem:[%s4 + $0x60] sm:$0xff]
        %v1001 = vld [vmem:[%s4 + $0x68] sm:$0xff]
        %v1002 = vld [vmem:[%s4 + $0x70] sm:$0xff]
        %v1003 = vld [vmem:[%s4 + $0x78] sm:$0xff]
        %v1004 = vld [vmem:[%s4 + $0x80] sm:$0xff]
        %v1005 = vld [vmem:[%s4 + $0x88] sm:$0xff]
        %v1006 = vld [vmem:[%s4 + $0x90] sm:$0xff]
        %v1007 = vld [vmem:[%s4 + $0x98] sm:$0xff]
        %v1008 = vld [vmem:[%s4 + $0xa0] sm:$0xff]
        %v1009 = vld [vmem:[%s4 + $0xa8] sm:$0xff]
        %v1010 = vld [vmem:[%s4 + $0xb0] sm:$0xff]
        %v1011 = vld [vmem:[%s4 + $0xb8] sm:$0xff]
        %v1012 = vld [vmem:[%s4 + $0xc0] sm:$0xff]
        %v1013 = vld [vmem:[%s4 + $0xc8] sm:$0xff]
        %v1014 = vld [vmem:[%s4 + $0xd0] sm:$0xff]
        %v1015 = vld [vmem:[%s4 + $0xd8] sm:$0xff]
        %v1016 = vld [vmem:[%s4 + $0xe0] sm:$0xff]
        %v1017 = vld [vmem:[%s4 + $0xe8] sm:$0xff]
        %v1018 = vld [vmem:[%s4 + $0xf0] sm:$0xff]
        %v1019 = vld [vmem:[%s4 + $0xf8] sm:$0xff]
        %v1020 = vld [vmem:[%s5] sm:$0xf]
        %v1021 = vld [vmem:[%s5 + $0x4] sm:$0xf]
        %v1022 = vld [vmem:[%s5 + $0x8] sm:$0xf]
        %v1023 = vld [vmem:[%s5 + $0xc] sm:$0xf]
        %v1024 = vld [vmem:[%s5 + $0x10] sm:$0xf]
        %v1025 = vld [vmem:[%s5 + $0x14] sm:$0xf]
        %v1026 = vld [vmem:[%s5 + $0x18] sm:$0xf]
        %v1027 = vld [vmem:[%s5 + $0x1c] sm:$0xf]
        %v1028 = vld [vmem:[%s5 + $0x20] sm:$0xf]
        %v1029 = vld [vmem:[%s5 + $0x24] sm:$0xf]
        %v1030 = vld [vmem:[%s5 + $0x28] sm:$0xf]
        %v1031 = vld [vmem:[%s5 + $0x2c] sm:$0xf]
        %v1032 = vld [vmem:[%s5 + $0x30] sm:$0xf]
        %v1033 = vld [vmem:[%s5 + $0x34] sm:$0xf]
        %v1034 = vld [vmem:[%s5 + $0x38] sm:$0xf]
        %v1035 = vld [vmem:[%s5 + $0x3c] sm:$0xf]
        %v1036 = vld [vmem:[%s5 + $0x40] sm:$0xf]
        %v1037 = vld [vmem:[%s5 + $0x44] sm:$0xf]
        %v1038 = vld [vmem:[%s5 + $0x48] sm:$0xf]
        %v1039 = vld [vmem:[%s5 + $0x4c] sm:$0xf]
        %v1040 = vld [vmem:[%s5 + $0x50] sm:$0xf]
        %v1041 = vld [vmem:[%s5 + $0x54] sm:$0xf]
        %v1042 = vld [vmem:[%s5 + $0x58] sm:$0xf]
        %v1043 = vld [vmem:[%s5 + $0x5c] sm:$0xf]
        %v1044 = vld [vmem:[%s5 + $0x60] sm:$0xf]
        %v1045 = vld [vmem:[%s5 + $0x64] sm:$0xf]
        %v1046 = vld [vmem:[%s5 + $0x68] sm:$0xf]
        %v1047 = vld [vmem:[%s5 + $0x6c] sm:$0xf]
        %v1048 = vld [vmem:[%s5 + $0x70] sm:$0xf]
        %v1049 = vld [vmem:[%s5 + $0x74] sm:$0xf]
        %v1050 = vld [vmem:[%s5 + $0x78] sm:$0xf]
        %v1051 = vld [vmem:[%s5 + $0x7c] sm:$0xf]
        %v1084 = vunpack.c.l.b16 %v1020
        %v1085 = vunpack.c.l.b16 %v1021
        %v1086 = vunpack.c.l.b16 %v1022
        %v1087 = vunpack.c.l.b16 %v1023
        %v1088 = vunpack.c.l.b16 %v1024
        %v1089 = vunpack.c.l.b16 %v1025
        %v1090 = vunpack.c.l.b16 %v1026
        %v1091 = vunpack.c.l.b16 %v1027
        %v1092 = vunpack.c.l.b16 %v1028
        %v1093 = vunpack.c.l.b16 %v1029
        %v1094 = vunpack.c.l.b16 %v1030
        %v1095 = vunpack.c.l.b16 %v1031
        %v1096 = vunpack.c.l.b16 %v1032
        %v1097 = vunpack.c.l.b16 %v1033
        %v1098 = vunpack.c.l.b16 %v1034
        %v1099 = vunpack.c.l.b16 %v1035
        %v1100 = vunpack.c.l.b16 %v1036
        %v1101 = vunpack.c.l.b16 %v1037
        %v1102 = vunpack.c.l.b16 %v1038
        %v1103 = vunpack.c.l.b16 %v1039
        %v1104 = vunpack.c.l.b16 %v1040
        %v1105 = vunpack.c.l.b16 %v1041
        %v1106 = vunpack.c.l.b16 %v1042
        %v1107 = vunpack.c.l.b16 %v1043
        %v1108 = vunpack.c.l.b16 %v1044
        %v1109 = vunpack.c.l.b16 %v1045
        %v1110 = vunpack.c.l.b16 %v1046
        %v1111 = vunpack.c.l.b16 %v1047
        %v1112 = vunpack.c.l.b16 %v1048
        %v1113 = vunpack.c.l.b16 %v1049
        %v1114 = vunpack.c.l.b16 %v1050
        %v1115 = vunpack.c.l.b16 %v1051
        %v1116 = vpack.c.b16 %v1085, %v1084
        %v1117 = vpack.c.b16 %v1087, %v1086
        %v1118 = vpack.c.b16 %v1089, %v1088
        %v1119 = vpack.c.b16 %v1091, %v1090
        %v1120 = vpack.c.b16 %v1093, %v1092
        %v1121 = vpack.c.b16 %v1095, %v1094
        %v1122 = vpack.c.b16 %v1097, %v1096
        %v1123 = vpack.c.b16 %v1099, %v1098
        %v1124 = vpack.c.b16 %v1101, %v1100
        %v1125 = vpack.c.b16 %v1103, %v1102
        %v1126 = vpack.c.b16 %v1105, %v1104
        %v1127 = vpack.c.b16 %v1107, %v1106
        %v1128 = vpack.c.b16 %v1109, %v1108
        %v1129 = vpack.c.b16 %v1111, %v1110
        %v1130 = vpack.c.b16 %v1113, %v1112
        %v1131 = vpack.c.b16 %v1115, %v1114
        %v1133 = vsel %vm574, %v1116, 0
        %v1136 = vsel %vm574, %v1117, 0
        %v1139 = vsel %vm574, %v1118, 0
        %v1142 = vsel %vm574, %v1119, 0
        %v1145 = vsel %vm574, %v1120, 0
        %v1148 = vsel %vm574, %v1121, 0
        %v1151 = vsel %vm574, %v1122, 0
        %v1154 = vsel %vm574, %v1123, 0
        %v1157 = vsel %vm574, %v1124, 0
        %v1160 = vsel %vm574, %v1125, 0
        %v1163 = vsel %vm574, %v1126, 0
        %v1166 = vsel %vm574, %v1127, 0
        %v1169 = vsel %vm574, %v1128, 0
        %v1172 = vsel %vm574, %v1129, 0
        %v1175 = vsel %vm574, %v1130, 0
        %v1178 = vsel %vm574, %v1131, 0
        %1180 = vmatpush.bf16.msra.mxu0 0
        %1181 = vmatpush.bf16.msra.mxu0 0
        %1182 = vmatpush.bf16.msra.mxu0 0
        %1183 = vmatpush.bf16.msra.mxu0 0
        %1184 = vmatpush.bf16.msra.mxu0 0
        %1185 = vmatpush.bf16.msra.mxu0 0
        %1186 = vmatpush.bf16.msra.mxu0 0
        %1187 = vmatpush.bf16.msra.mxu0 %v628
        %1188 = vmatmul.bf16.gmra.mxu0 %v1133
        %v1189 = vpop.f32.mrf.mxu0
        %v1190 = vadd.f32 0.0, %v1189
        %v1191 = vpop.f32.mrf.mxu0
        %v1192 = vadd.f32 0.0, %v1191
        %1193 = vmatmul.bf16.gmra.mxu0 %v1136
        %v1194 = vpop.f32.mrf.mxu0
        %v1195 = vadd.f32 0.0, %v1194
        %v1196 = vpop.f32.mrf.mxu0
        %v1197 = vadd.f32 0.0, %v1196
        %1198 = vmatmul.bf16.gmra.mxu0 %v1139
        %v1199 = vpop.f32.mrf.mxu0
        %v1200 = vadd.f32 0.0, %v1199
        %v1201 = vpop.f32.mrf.mxu0
        %v1202 = vadd.f32 0.0, %v1201
        %1203 = vmatmul.bf16.gmra.mxu0 %v1142
        %v1204 = vpop.f32.mrf.mxu0
        %v1205 = vadd.f32 0.0, %v1204
        %v1206 = vpop.f32.mrf.mxu0
        %v1207 = vadd.f32 0.0, %v1206
        %1208 = vmatmul.bf16.gmra.mxu0 %v1145
        %v1209 = vpop.f32.mrf.mxu0
        %v1210 = vadd.f32 0.0, %v1209
        %v1211 = vpop.f32.mrf.mxu0
        %v1212 = vadd.f32 0.0, %v1211
        %1213 = vmatmul.bf16.gmra.mxu0 %v1148
        %v1214 = vpop.f32.mrf.mxu0
        %v1215 = vadd.f32 0.0, %v1214
        %v1216 = vpop.f32.mrf.mxu0
        %v1217 = vadd.f32 0.0, %v1216
        %1218 = vmatmul.bf16.gmra.mxu0 %v1151
        %v1219 = vpop.f32.mrf.mxu0
        %v1220 = vadd.f32 0.0, %v1219
        %v1221 = vpop.f32.mrf.mxu0
        %v1222 = vadd.f32 0.0, %v1221
        %1223 = vmatmul.bf16.gmra.mxu0 %v1154
        %v1224 = vpop.f32.mrf.mxu0
        %v1225 = vadd.f32 0.0, %v1224
        %v1226 = vpop.f32.mrf.mxu0
        %v1227 = vadd.f32 0.0, %v1226
        %1228 = vmatmul.bf16.gmra.mxu0 %v1157
        %v1229 = vpop.f32.mrf.mxu0
        %v1230 = vadd.f32 0.0, %v1229
        %v1231 = vpop.f32.mrf.mxu0
        %v1232 = vadd.f32 0.0, %v1231
        %1233 = vmatmul.bf16.gmra.mxu0 %v1160
        %v1234 = vpop.f32.mrf.mxu0
        %v1235 = vadd.f32 0.0, %v1234
        %v1236 = vpop.f32.mrf.mxu0
        %v1237 = vadd.f32 0.0, %v1236
        %1238 = vmatmul.bf16.gmra.mxu0 %v1163
        %v1239 = vpop.f32.mrf.mxu0
        %v1240 = vadd.f32 0.0, %v1239
        %v1241 = vpop.f32.mrf.mxu0
        %v1242 = vadd.f32 0.0, %v1241
        %1243 = vmatmul.bf16.gmra.mxu0 %v1166
        %v1244 = vpop.f32.mrf.mxu0
        %v1245 = vadd.f32 0.0, %v1244
        %v1246 = vpop.f32.mrf.mxu0
        %v1247 = vadd.f32 0.0, %v1246
        %1248 = vmatmul.bf16.gmra.mxu0 %v1169
        %v1249 = vpop.f32.mrf.mxu0
        %v1250 = vadd.f32 0.0, %v1249
        %v1251 = vpop.f32.mrf.mxu0
        %v1252 = vadd.f32 0.0, %v1251
        %1253 = vmatmul.bf16.gmra.mxu0 %v1172
        %v1254 = vpop.f32.mrf.mxu0
        %v1255 = vadd.f32 0.0, %v1254
        %v1256 = vpop.f32.mrf.mxu0
        %v1257 = vadd.f32 0.0, %v1256
        %1258 = vmatmul.bf16.gmra.mxu0 %v1175
        %v1259 = vpop.f32.mrf.mxu0
        %v1260 = vadd.f32 0.0, %v1259
        %v1261 = vpop.f32.mrf.mxu0
        %v1262 = vadd.f32 0.0, %v1261
        %1263 = vmatmul.bf16.gmra.mxu0 %v1178
        %v1264 = vpop.f32.mrf.mxu0
        %v1265 = vadd.f32 0.0, %v1264
        %v1266 = vpop.f32.mrf.mxu0
        %v1267 = vadd.f32 0.0, %v1266
        %1268 = vdwg.mxu0
        %v1301 = vunpack.c.l.b16 %v988
        %v1302 = vunpack.c.h.b16 %v988
        %v1303 = vunpack.c.l.b16 %v989
        %v1304 = vunpack.c.h.b16 %v989
        %v1305 = vunpack.c.l.b16 %v990
        %v1306 = vunpack.c.h.b16 %v990
        %v1307 = vunpack.c.l.b16 %v991
        %v1308 = vunpack.c.h.b16 %v991
        %v1309 = vunpack.c.l.b16 %v992
        %v1310 = vunpack.c.h.b16 %v992
        %v1311 = vunpack.c.l.b16 %v993
        %v1312 = vunpack.c.h.b16 %v993
        %v1313 = vunpack.c.l.b16 %v994
        %v1314 = vunpack.c.h.b16 %v994
        %v1315 = vunpack.c.l.b16 %v995
        %v1316 = vunpack.c.h.b16 %v995
        %v1317 = vunpack.c.l.b16 %v996
        %v1318 = vunpack.c.h.b16 %v996
        %v1319 = vunpack.c.l.b16 %v997
        %v1320 = vunpack.c.h.b16 %v997
        %v1321 = vunpack.c.l.b16 %v998
        %v1322 = vunpack.c.h.b16 %v998
        %v1323 = vunpack.c.l.b16 %v999
        %v1324 = vunpack.c.h.b16 %v999
        %v1325 = vunpack.c.l.b16 %v1000
        %v1326 = vunpack.c.h.b16 %v1000
        %v1327 = vunpack.c.l.b16 %v1001
        %v1328 = vunpack.c.h.b16 %v1001
        %v1329 = vunpack.c.l.b16 %v1002
        %v1330 = vunpack.c.h.b16 %v1002
        %v1331 = vunpack.c.l.b16 %v1003
        %v1332 = vunpack.c.h.b16 %v1003
        %v1333 = vunpack.c.l.b16 %v1004
        %v1334 = vunpack.c.h.b16 %v1004
        %v1335 = vunpack.c.l.b16 %v1005
        %v1336 = vunpack.c.h.b16 %v1005
        %v1337 = vunpack.c.l.b16 %v1006
        %v1338 = vunpack.c.h.b16 %v1006
        %v1339 = vunpack.c.l.b16 %v1007
        %v1340 = vunpack.c.h.b16 %v1007
        %v1341 = vunpack.c.l.b16 %v1008
        %v1342 = vunpack.c.h.b16 %v1008
        %v1343 = vunpack.c.l.b16 %v1009
        %v1344 = vunpack.c.h.b16 %v1009
        %v1345 = vunpack.c.l.b16 %v1010
        %v1346 = vunpack.c.h.b16 %v1010
        %v1347 = vunpack.c.l.b16 %v1011
        %v1348 = vunpack.c.h.b16 %v1011
        %v1349 = vunpack.c.l.b16 %v1012
        %v1350 = vunpack.c.h.b16 %v1012
        %v1351 = vunpack.c.l.b16 %v1013
        %v1352 = vunpack.c.h.b16 %v1013
        %v1353 = vunpack.c.l.b16 %v1014
        %v1354 = vunpack.c.h.b16 %v1014
        %v1355 = vunpack.c.l.b16 %v1015
        %v1356 = vunpack.c.h.b16 %v1015
        %v1357 = vunpack.c.l.b16 %v1016
        %v1358 = vunpack.c.h.b16 %v1016
        %v1359 = vunpack.c.l.b16 %v1017
        %v1360 = vunpack.c.h.b16 %v1017
        %v1361 = vunpack.c.l.b16 %v1018
        %v1362 = vunpack.c.h.b16 %v1018
        %v1363 = vunpack.c.l.b16 %v1019
        %v1364 = vunpack.c.h.b16 %v1019
        %v1365 = vpack.c.b16 %v1303, %v1301
        %v1366 = vpack.c.b16 %v1304, %v1302
        %v1367 = vpack.c.b16 %v1307, %v1305
        %v1368 = vpack.c.b16 %v1308, %v1306
        %v1369 = vpack.c.b16 %v1311, %v1309
        %v1370 = vpack.c.b16 %v1312, %v1310
        %v1371 = vpack.c.b16 %v1315, %v1313
        %v1372 = vpack.c.b16 %v1316, %v1314
        %v1373 = vpack.c.b16 %v1319, %v1317
        %v1374 = vpack.c.b16 %v1320, %v1318
        %v1375 = vpack.c.b16 %v1323, %v1321
        %v1376 = vpack.c.b16 %v1324, %v1322
        %v1377 = vpack.c.b16 %v1327, %v1325
        %v1378 = vpack.c.b16 %v1328, %v1326
        %v1379 = vpack.c.b16 %v1331, %v1329
        %v1380 = vpack.c.b16 %v1332, %v1330
        %v1381 = vpack.c.b16 %v1335, %v1333
        %v1382 = vpack.c.b16 %v1336, %v1334
        %v1383 = vpack.c.b16 %v1339, %v1337
        %v1384 = vpack.c.b16 %v1340, %v1338
        %v1385 = vpack.c.b16 %v1343, %v1341
        %v1386 = vpack.c.b16 %v1344, %v1342
        %v1387 = vpack.c.b16 %v1347, %v1345
        %v1388 = vpack.c.b16 %v1348, %v1346
        %v1389 = vpack.c.b16 %v1351, %v1349
        %v1390 = vpack.c.b16 %v1352, %v1350
        %v1391 = vpack.c.b16 %v1355, %v1353
        %v1392 = vpack.c.b16 %v1356, %v1354
        %v1393 = vpack.c.b16 %v1359, %v1357
        %v1394 = vpack.c.b16 %v1360, %v1358
        %v1395 = vpack.c.b16 %v1363, %v1361
        %v1396 = vpack.c.b16 %v1364, %v1362
        %1429 = vmatpush.bf16.msra.mxu0 %v979
        %1430 = vmatpush.bf16.msra.mxu0 %v978
        %1431 = vmatpush.bf16.msra.mxu0 %v977
        %1432 = vmatpush.bf16.msra.mxu0 %v976
        %1433 = vmatpush.bf16.msra.mxu0 %v975
        %1434 = vmatpush.bf16.msra.mxu0 %v974
        %1435 = vmatpush.bf16.msra.mxu0 %v973
        %1436 = vmatpush.bf16.msra.mxu0 %v972
        %1437 = vmatmul.bf16.gmra.mxu0 %v1365
        %v1438 = vpop.f32.mrf.mxu0
        %v1439 = vadd.f32 %v1190, %v1438
        %v1440 = vpop.f32.mrf.mxu0
        %v1441 = vadd.f32 %v1192, %v1440
        %1442 = vmatmul.bf16.gmra.mxu0 %v1367
        %v1443 = vpop.f32.mrf.mxu0
        %v1444 = vadd.f32 %v1195, %v1443
        %v1445 = vpop.f32.mrf.mxu0
        %v1446 = vadd.f32 %v1197, %v1445
        %1447 = vmatmul.bf16.gmra.mxu0 %v1369
        %v1448 = vpop.f32.mrf.mxu0
        %v1449 = vadd.f32 %v1200, %v1448
        %v1450 = vpop.f32.mrf.mxu0
        %v1451 = vadd.f32 %v1202, %v1450
        %1452 = vmatmul.bf16.gmra.mxu0 %v1371
        %v1453 = vpop.f32.mrf.mxu0
        %v1454 = vadd.f32 %v1205, %v1453
        %v1455 = vpop.f32.mrf.mxu0
        %v1456 = vadd.f32 %v1207, %v1455
        %1457 = vmatmul.bf16.gmra.mxu0 %v1373
        %v1458 = vpop.f32.mrf.mxu0
        %v1459 = vadd.f32 %v1210, %v1458
        %v1460 = vpop.f32.mrf.mxu0
        %v1461 = vadd.f32 %v1212, %v1460
        %1462 = vmatmul.bf16.gmra.mxu0 %v1375
        %v1463 = vpop.f32.mrf.mxu0
        %v1464 = vadd.f32 %v1215, %v1463
        %v1465 = vpop.f32.mrf.mxu0
        %v1466 = vadd.f32 %v1217, %v1465
        %1467 = vmatmul.bf16.gmra.mxu0 %v1377
        %v1468 = vpop.f32.mrf.mxu0
        %v1469 = vadd.f32 %v1220, %v1468
        %v1470 = vpop.f32.mrf.mxu0
        %v1471 = vadd.f32 %v1222, %v1470
        %1472 = vmatmul.bf16.gmra.mxu0 %v1379
        %v1473 = vpop.f32.mrf.mxu0
        %v1474 = vadd.f32 %v1225, %v1473
        %v1475 = vpop.f32.mrf.mxu0
        %v1476 = vadd.f32 %v1227, %v1475
        %1477 = vmatmul.bf16.gmra.mxu0 %v1381
        %v1478 = vpop.f32.mrf.mxu0
        %v1479 = vadd.f32 %v1230, %v1478
        %v1480 = vpop.f32.mrf.mxu0
        %v1481 = vadd.f32 %v1232, %v1480
        %1482 = vmatmul.bf16.gmra.mxu0 %v1383
        %v1483 = vpop.f32.mrf.mxu0
        %v1484 = vadd.f32 %v1235, %v1483
        %v1485 = vpop.f32.mrf.mxu0
        %v1486 = vadd.f32 %v1237, %v1485
        %1487 = vmatmul.bf16.gmra.mxu0 %v1385
        %v1488 = vpop.f32.mrf.mxu0
        %v1489 = vadd.f32 %v1240, %v1488
        %v1490 = vpop.f32.mrf.mxu0
        %v1491 = vadd.f32 %v1242, %v1490
        %1492 = vmatmul.bf16.gmra.mxu0 %v1387
        %v1493 = vpop.f32.mrf.mxu0
        %v1494 = vadd.f32 %v1245, %v1493
        %v1495 = vpop.f32.mrf.mxu0
        %v1496 = vadd.f32 %v1247, %v1495
        %1497 = vmatmul.bf16.gmra.mxu0 %v1389
        %v1498 = vpop.f32.mrf.mxu0
        %v1499 = vadd.f32 %v1250, %v1498
        %v1500 = vpop.f32.mrf.mxu0
        %v1501 = vadd.f32 %v1252, %v1500
        %1502 = vmatmul.bf16.gmra.mxu0 %v1391
        %v1503 = vpop.f32.mrf.mxu0
        %v1504 = vadd.f32 %v1255, %v1503
        %v1505 = vpop.f32.mrf.mxu0
        %v1506 = vadd.f32 %v1257, %v1505
        %1507 = vmatmul.bf16.gmra.mxu0 %v1393
        %v1508 = vpop.f32.mrf.mxu0
        %v1509 = vadd.f32 %v1260, %v1508
        %v1510 = vpop.f32.mrf.mxu0
        %v1511 = vadd.f32 %v1262, %v1510
        %1512 = vmatmul.bf16.gmra.mxu0 %v1395
        %v1513 = vpop.f32.mrf.mxu0
        %v1514 = vadd.f32 %v1265, %v1513
        %v1515 = vpop.f32.mrf.mxu0
        %v1516 = vadd.f32 %v1267, %v1515
        %1517 = vdwg.mxu0
        %1518 = vmatpush.bf16.msra.mxu0 %v987
        %1519 = vmatpush.bf16.msra.mxu0 %v986
        %1520 = vmatpush.bf16.msra.mxu0 %v985
        %1521 = vmatpush.bf16.msra.mxu0 %v984
        %1522 = vmatpush.bf16.msra.mxu0 %v983
        %1523 = vmatpush.bf16.msra.mxu0 %v982
        %1524 = vmatpush.bf16.msra.mxu0 %v981
        %1525 = vmatpush.bf16.msra.mxu0 %v980
        %1526 = vmatmul.bf16.gmra.mxu0 %v1366
        %v1527 = vpop.f32.mrf.mxu0
        %v1528 = vadd.f32 %v1439, %v1527
        %v1529 = vpop.f32.mrf.mxu0
        %v1530 = vadd.f32 %v1441, %v1529
        %1531 = vmatmul.bf16.gmra.mxu0 %v1368
        %v1532 = vpop.f32.mrf.mxu0
        %v1533 = vadd.f32 %v1444, %v1532
        %v1534 = vpop.f32.mrf.mxu0
        %v1535 = vadd.f32 %v1446, %v1534
        %1536 = vmatmul.bf16.gmra.mxu0 %v1370
        %v1537 = vpop.f32.mrf.mxu0
        %v1538 = vadd.f32 %v1449, %v1537
        %v1539 = vpop.f32.mrf.mxu0
        %v1540 = vadd.f32 %v1451, %v1539
        %1541 = vmatmul.bf16.gmra.mxu0 %v1372
        %v1542 = vpop.f32.mrf.mxu0
        %v1543 = vadd.f32 %v1454, %v1542
        %v1544 = vpop.f32.mrf.mxu0
        %v1545 = vadd.f32 %v1456, %v1544
        %1546 = vmatmul.bf16.gmra.mxu0 %v1374
        %v1547 = vpop.f32.mrf.mxu0
        %v1548 = vadd.f32 %v1459, %v1547
        %v1549 = vpop.f32.mrf.mxu0
        %v1550 = vadd.f32 %v1461, %v1549
        %1551 = vmatmul.bf16.gmra.mxu0 %v1376
        %v1552 = vpop.f32.mrf.mxu0
        %v1553 = vadd.f32 %v1464, %v1552
        %v1554 = vpop.f32.mrf.mxu0
        %v1555 = vadd.f32 %v1466, %v1554
        %1556 = vmatmul.bf16.gmra.mxu0 %v1378
        %v1557 = vpop.f32.mrf.mxu0
        %v1558 = vadd.f32 %v1469, %v1557
        %v1559 = vpop.f32.mrf.mxu0
        %v1560 = vadd.f32 %v1471, %v1559
        %1561 = vmatmul.bf16.gmra.mxu0 %v1380
        %v1562 = vpop.f32.mrf.mxu0
        %v1563 = vadd.f32 %v1474, %v1562
        %v1564 = vpop.f32.mrf.mxu0
        %v1565 = vadd.f32 %v1476, %v1564
        %1566 = vmatmul.bf16.gmra.mxu0 %v1382
        %v1567 = vpop.f32.mrf.mxu0
        %v1568 = vadd.f32 %v1479, %v1567
        %v1569 = vpop.f32.mrf.mxu0
        %v1570 = vadd.f32 %v1481, %v1569
        %1571 = vmatmul.bf16.gmra.mxu0 %v1384
        %v1572 = vpop.f32.mrf.mxu0
        %v1573 = vadd.f32 %v1484, %v1572
        %v1574 = vpop.f32.mrf.mxu0
        %v1575 = vadd.f32 %v1486, %v1574
        %1576 = vmatmul.bf16.gmra.mxu0 %v1386
        %v1577 = vpop.f32.mrf.mxu0
        %v1578 = vadd.f32 %v1489, %v1577
        %v1579 = vpop.f32.mrf.mxu0
        %v1580 = vadd.f32 %v1491, %v1579
        %1581 = vmatmul.bf16.gmra.mxu0 %v1388
        %v1582 = vpop.f32.mrf.mxu0
        %v1583 = vadd.f32 %v1494, %v1582
        %v1584 = vpop.f32.mrf.mxu0
        %v1585 = vadd.f32 %v1496, %v1584
        %1586 = vmatmul.bf16.gmra.mxu0 %v1390
        %v1587 = vpop.f32.mrf.mxu0
        %v1588 = vadd.f32 %v1499, %v1587
        %v1589 = vpop.f32.mrf.mxu0
        %v1590 = vadd.f32 %v1501, %v1589
        %1591 = vmatmul.bf16.gmra.mxu0 %v1392
        %v1592 = vpop.f32.mrf.mxu0
        %v1593 = vadd.f32 %v1504, %v1592
        %v1594 = vpop.f32.mrf.mxu0
        %v1595 = vadd.f32 %v1506, %v1594
        %1596 = vmatmul.bf16.gmra.mxu0 %v1394
        %v1597 = vpop.f32.mrf.mxu0
        %v1598 = vadd.f32 %v1509, %v1597
        %v1599 = vpop.f32.mrf.mxu0
        %v1600 = vadd.f32 %v1511, %v1599
        %1601 = vmatmul.bf16.gmra.mxu0 %v1396
        %v1602 = vpop.f32.mrf.mxu0
        %v1603 = vadd.f32 %v1514, %v1602
        %v1604 = vpop.f32.mrf.mxu0
        %v1605 = vadd.f32 %v1516, %v1604
        %1606 = vdwg.mxu0
        %v1607 = vmax.f32 %v1528, 0.0
        %v1608 = vmax.f32 %v1530, 0.0
        %v1609 = vmax.f32 %v1533, 0.0
        %v1610 = vmax.f32 %v1535, 0.0
        %v1611 = vmax.f32 %v1538, 0.0
        %v1612 = vmax.f32 %v1540, 0.0
        %v1613 = vmax.f32 %v1543, 0.0
        %v1614 = vmax.f32 %v1545, 0.0
        %v1615 = vmax.f32 %v1548, 0.0
        %v1616 = vmax.f32 %v1550, 0.0
        %v1617 = vmax.f32 %v1553, 0.0
        %v1618 = vmax.f32 %v1555, 0.0
        %v1619 = vmax.f32 %v1558, 0.0
        %v1620 = vmax.f32 %v1560, 0.0
        %v1621 = vmax.f32 %v1563, 0.0
        %v1622 = vmax.f32 %v1565, 0.0
        %v1623 = vmax.f32 %v1568, 0.0
        %v1624 = vmax.f32 %v1570, 0.0
        %v1625 = vmax.f32 %v1573, 0.0
        %v1626 = vmax.f32 %v1575, 0.0
        %v1627 = vmax.f32 %v1578, 0.0
        %v1628 = vmax.f32 %v1580, 0.0
        %v1629 = vmax.f32 %v1583, 0.0
        %v1630 = vmax.f32 %v1585, 0.0
        %v1631 = vmax.f32 %v1588, 0.0
        %v1632 = vmax.f32 %v1590, 0.0
        %v1633 = vmax.f32 %v1593, 0.0
        %v1634 = vmax.f32 %v1595, 0.0
        %v1635 = vmax.f32 %v1598, 0.0
        %v1636 = vmax.f32 %v1600, 0.0
        %v1637 = vmax.f32 %v1603, 0.0
        %v1638 = vmax.f32 %v1605, 0.0
        %v1639 = vpack.c.bf16 %v1608, %v1607
        %v1640 = vpack.c.bf16 %v1610, %v1609
        %v1641 = vpack.c.bf16 %v1612, %v1611
        %v1642 = vpack.c.bf16 %v1614, %v1613
        %v1643 = vpack.c.bf16 %v1616, %v1615
        %v1644 = vpack.c.bf16 %v1618, %v1617
        %v1645 = vpack.c.bf16 %v1620, %v1619
        %v1646 = vpack.c.bf16 %v1622, %v1621
        %v1647 = vpack.c.bf16 %v1624, %v1623
        %v1648 = vpack.c.bf16 %v1626, %v1625
        %v1649 = vpack.c.bf16 %v1628, %v1627
        %v1650 = vpack.c.bf16 %v1630, %v1629
        %v1651 = vpack.c.bf16 %v1632, %v1631
        %v1652 = vpack.c.bf16 %v1634, %v1633
        %v1653 = vpack.c.bf16 %v1636, %v1635
        %v1654 = vpack.c.bf16 %v1638, %v1637
        %v1655 = vld [vmem:[#allocation2] sm:$0xff]
        %v1656 = vld [vmem:[#allocation2 + $0x8] sm:$0xff]
        %v1657 = vld [vmem:[#allocation2 + $0x10] sm:$0xff]
        %v1658 = vld [vmem:[#allocation2 + $0x18] sm:$0xff]
        %v1659 = vld [vmem:[#allocation2 + $0x20] sm:$0xff]
        %v1660 = vld [vmem:[#allocation2 + $0x28] sm:$0xff]
        %v1661 = vld [vmem:[#allocation2 + $0x30] sm:$0xff]
        %v1662 = vld [vmem:[#allocation2 + $0x38] sm:$0xff]
        %v1663 = vld [vmem:[#allocation2 + $0x40] sm:$0xff]
        %v1664 = vld [vmem:[#allocation2 + $0x48] sm:$0xff]
        %v1665 = vld [vmem:[#allocation2 + $0x50] sm:$0xff]
        %v1666 = vld [vmem:[#allocation2 + $0x58] sm:$0xff]
        %v1667 = vld [vmem:[#allocation2 + $0x60] sm:$0xff]
        %v1668 = vld [vmem:[#allocation2 + $0x68] sm:$0xff]
        %v1669 = vld [vmem:[#allocation2 + $0x70] sm:$0xff]
        %v1670 = vld [vmem:[#allocation2 + $0x78] sm:$0xff]
        %v1671 = vld [vmem:[#allocation2 + $0x80] sm:$0xff]
        %v1672 = vld [vmem:[#allocation2 + $0x88] sm:$0xff]
        %v1673 = vld [vmem:[#allocation2 + $0x90] sm:$0xff]
        %v1674 = vld [vmem:[#allocation2 + $0x98] sm:$0xff]
        %v1675 = vld [vmem:[#allocation2 + $0xa0] sm:$0xff]
        %v1676 = vld [vmem:[#allocation2 + $0xa8] sm:$0xff]
        %v1677 = vld [vmem:[#allocation2 + $0xb0] sm:$0xff]
        %v1678 = vld [vmem:[#allocation2 + $0xb8] sm:$0xff]
        %v1679 = vld [vmem:[#allocation2 + $0xc0] sm:$0xff]
        %v1680 = vld [vmem:[#allocation2 + $0xc8] sm:$0xff]
        %v1681 = vld [vmem:[#allocation2 + $0xd0] sm:$0xff]
        %v1682 = vld [vmem:[#allocation2 + $0xd8] sm:$0xff]
        %v1683 = vld [vmem:[#allocation2 + $0xe0] sm:$0xff]
        %v1684 = vld [vmem:[#allocation2 + $0xe8] sm:$0xff]
        %v1685 = vld [vmem:[#allocation2 + $0xf0] sm:$0xff]
        %v1686 = vld [vmem:[#allocation2 + $0xf8] sm:$0xff]
        %v1687 = vld [vmem:[%s7] sm:$0xf]
        %v1688 = vld [vmem:[%s7 + $0x4] sm:$0xf]
        %v1689 = vld [vmem:[%s7 + $0x8] sm:$0xf]
        %v1690 = vld [vmem:[%s7 + $0xc] sm:$0xf]
        %v1691 = vld [vmem:[%s7 + $0x10] sm:$0xf]
        %v1692 = vld [vmem:[%s7 + $0x14] sm:$0xf]
        %v1693 = vld [vmem:[%s7 + $0x18] sm:$0xf]
        %v1694 = vld [vmem:[%s7 + $0x1c] sm:$0xf]
        %v1695 = vld [vmem:[%s7 + $0x20] sm:$0xf]
        %v1696 = vld [vmem:[%s7 + $0x24] sm:$0xf]
        %v1697 = vld [vmem:[%s7 + $0x28] sm:$0xf]
        %v1698 = vld [vmem:[%s7 + $0x2c] sm:$0xf]
        %v1699 = vld [vmem:[%s7 + $0x30] sm:$0xf]
        %v1700 = vld [vmem:[%s7 + $0x34] sm:$0xf]
        %v1701 = vld [vmem:[%s7 + $0x38] sm:$0xf]
        %v1702 = vld [vmem:[%s7 + $0x3c] sm:$0xf]
        %v1703 = vld [vmem:[%s7 + $0x40] sm:$0xf]
        %v1704 = vld [vmem:[%s7 + $0x44] sm:$0xf]
        %v1705 = vld [vmem:[%s7 + $0x48] sm:$0xf]
        %v1706 = vld [vmem:[%s7 + $0x4c] sm:$0xf]
        %v1707 = vld [vmem:[%s7 + $0x50] sm:$0xf]
        %v1708 = vld [vmem:[%s7 + $0x54] sm:$0xf]
        %v1709 = vld [vmem:[%s7 + $0x58] sm:$0xf]
        %v1710 = vld [vmem:[%s7 + $0x5c] sm:$0xf]
        %v1711 = vld [vmem:[%s7 + $0x60] sm:$0xf]
        %v1712 = vld [vmem:[%s7 + $0x64] sm:$0xf]
        %v1713 = vld [vmem:[%s7 + $0x68] sm:$0xf]
        %v1714 = vld [vmem:[%s7 + $0x6c] sm:$0xf]
        %v1715 = vld [vmem:[%s7 + $0x70] sm:$0xf]
        %v1716 = vld [vmem:[%s7 + $0x74] sm:$0xf]
        %v1717 = vld [vmem:[%s7 + $0x78] sm:$0xf]
        %v1718 = vld [vmem:[%s7 + $0x7c] sm:$0xf]
        %v1751 = vunpack.c.l.b16 %v1687
        %v1752 = vunpack.c.l.b16 %v1688
        %v1753 = vunpack.c.l.b16 %v1689
        %v1754 = vunpack.c.l.b16 %v1690
        %v1755 = vunpack.c.l.b16 %v1691
        %v1756 = vunpack.c.l.b16 %v1692
        %v1757 = vunpack.c.l.b16 %v1693
        %v1758 = vunpack.c.l.b16 %v1694
        %v1759 = vunpack.c.l.b16 %v1695
        %v1760 = vunpack.c.l.b16 %v1696
        %v1761 = vunpack.c.l.b16 %v1697
        %v1762 = vunpack.c.l.b16 %v1698
        %v1763 = vunpack.c.l.b16 %v1699
        %v1764 = vunpack.c.l.b16 %v1700
        %v1765 = vunpack.c.l.b16 %v1701
        %v1766 = vunpack.c.l.b16 %v1702
        %v1767 = vunpack.c.l.b16 %v1703
        %v1768 = vunpack.c.l.b16 %v1704
        %v1769 = vunpack.c.l.b16 %v1705
        %v1770 = vunpack.c.l.b16 %v1706
        %v1771 = vunpack.c.l.b16 %v1707
        %v1772 = vunpack.c.l.b16 %v1708
        %v1773 = vunpack.c.l.b16 %v1709
        %v1774 = vunpack.c.l.b16 %v1710
        %v1775 = vunpack.c.l.b16 %v1711
        %v1776 = vunpack.c.l.b16 %v1712
        %v1777 = vunpack.c.l.b16 %v1713
        %v1778 = vunpack.c.l.b16 %v1714
        %v1779 = vunpack.c.l.b16 %v1715
        %v1780 = vunpack.c.l.b16 %v1716
        %v1781 = vunpack.c.l.b16 %v1717
        %v1782 = vunpack.c.l.b16 %v1718
        %v1783 = vpack.c.b16 %v1752, %v1751
        %v1784 = vpack.c.b16 %v1754, %v1753
        %v1785 = vpack.c.b16 %v1756, %v1755
        %v1786 = vpack.c.b16 %v1758, %v1757
        %v1787 = vpack.c.b16 %v1760, %v1759
        %v1788 = vpack.c.b16 %v1762, %v1761
        %v1789 = vpack.c.b16 %v1764, %v1763
        %v1790 = vpack.c.b16 %v1766, %v1765
        %v1791 = vpack.c.b16 %v1768, %v1767
        %v1792 = vpack.c.b16 %v1770, %v1769
        %v1793 = vpack.c.b16 %v1772, %v1771
        %v1794 = vpack.c.b16 %v1774, %v1773
        %v1795 = vpack.c.b16 %v1776, %v1775
        %v1796 = vpack.c.b16 %v1778, %v1777
        %v1797 = vpack.c.b16 %v1780, %v1779
        %v1798 = vpack.c.b16 %v1782, %v1781
        %v1800 = vsel %vm574, %v1783, 0
        %v1803 = vsel %vm574, %v1784, 0
        %v1806 = vsel %vm574, %v1785, 0
        %v1809 = vsel %vm574, %v1786, 0
        %v1812 = vsel %vm574, %v1787, 0
        %v1815 = vsel %vm574, %v1788, 0
        %v1818 = vsel %vm574, %v1789, 0
        %v1821 = vsel %vm574, %v1790, 0
        %v1824 = vsel %vm574, %v1791, 0
        %v1827 = vsel %vm574, %v1792, 0
        %v1830 = vsel %vm574, %v1793, 0
        %v1833 = vsel %vm574, %v1794, 0
        %v1836 = vsel %vm574, %v1795, 0
        %v1839 = vsel %vm574, %v1796, 0
        %v1842 = vsel %vm574, %v1797, 0
        %v1845 = vsel %vm574, %v1798, 0
        %1847 = vmatpush.bf16.msra.mxu0 0
        %1848 = vmatpush.bf16.msra.mxu0 0
        %1849 = vmatpush.bf16.msra.mxu0 0
        %1850 = vmatpush.bf16.msra.mxu0 0
        %1851 = vmatpush.bf16.msra.mxu0 0
        %1852 = vmatpush.bf16.msra.mxu0 0
        %1853 = vmatpush.bf16.msra.mxu0 0
        %1854 = vmatpush.bf16.msra.mxu0 %v628
        %1855 = vmatmul.bf16.gmra.mxu0 %v1800
        %v1856 = vpop.f32.mrf.mxu0
        %v1857 = vadd.f32 0.0, %v1856
        %v1858 = vpop.f32.mrf.mxu0
        %v1859 = vadd.f32 0.0, %v1858
        %1860 = vmatmul.bf16.gmra.mxu0 %v1803
        %v1861 = vpop.f32.mrf.mxu0
        %v1862 = vadd.f32 0.0, %v1861
        %v1863 = vpop.f32.mrf.mxu0
        %v1864 = vadd.f32 0.0, %v1863
        %1865 = vmatmul.bf16.gmra.mxu0 %v1806
        %v1866 = vpop.f32.mrf.mxu0
        %v1867 = vadd.f32 0.0, %v1866
        %v1868 = vpop.f32.mrf.mxu0
        %v1869 = vadd.f32 0.0, %v1868
        %1870 = vmatmul.bf16.gmra.mxu0 %v1809
        %v1871 = vpop.f32.mrf.mxu0
        %v1872 = vadd.f32 0.0, %v1871
        %v1873 = vpop.f32.mrf.mxu0
        %v1874 = vadd.f32 0.0, %v1873
        %1875 = vmatmul.bf16.gmra.mxu0 %v1812
        %v1876 = vpop.f32.mrf.mxu0
        %v1877 = vadd.f32 0.0, %v1876
        %v1878 = vpop.f32.mrf.mxu0
        %v1879 = vadd.f32 0.0, %v1878
        %1880 = vmatmul.bf16.gmra.mxu0 %v1815
        %v1881 = vpop.f32.mrf.mxu0
        %v1882 = vadd.f32 0.0, %v1881
        %v1883 = vpop.f32.mrf.mxu0
        %v1884 = vadd.f32 0.0, %v1883
        %1885 = vmatmul.bf16.gmra.mxu0 %v1818
        %v1886 = vpop.f32.mrf.mxu0
        %v1887 = vadd.f32 0.0, %v1886
        %v1888 = vpop.f32.mrf.mxu0
        %v1889 = vadd.f32 0.0, %v1888
        %1890 = vmatmul.bf16.gmra.mxu0 %v1821
        %v1891 = vpop.f32.mrf.mxu0
        %v1892 = vadd.f32 0.0, %v1891
        %v1893 = vpop.f32.mrf.mxu0
        %v1894 = vadd.f32 0.0, %v1893
        %1895 = vmatmul.bf16.gmra.mxu0 %v1824
        %v1896 = vpop.f32.mrf.mxu0
        %v1897 = vadd.f32 0.0, %v1896
        %v1898 = vpop.f32.mrf.mxu0
        %v1899 = vadd.f32 0.0, %v1898
        %1900 = vmatmul.bf16.gmra.mxu0 %v1827
        %v1901 = vpop.f32.mrf.mxu0
        %v1902 = vadd.f32 0.0, %v1901
        %v1903 = vpop.f32.mrf.mxu0
        %v1904 = vadd.f32 0.0, %v1903
        %1905 = vmatmul.bf16.gmra.mxu0 %v1830
        %v1906 = vpop.f32.mrf.mxu0
        %v1907 = vadd.f32 0.0, %v1906
        %v1908 = vpop.f32.mrf.mxu0
        %v1909 = vadd.f32 0.0, %v1908
        %1910 = vmatmul.bf16.gmra.mxu0 %v1833
        %v1911 = vpop.f32.mrf.mxu0
        %v1912 = vadd.f32 0.0, %v1911
        %v1913 = vpop.f32.mrf.mxu0
        %v1914 = vadd.f32 0.0, %v1913
        %1915 = vmatmul.bf16.gmra.mxu0 %v1836
        %v1916 = vpop.f32.mrf.mxu0
        %v1917 = vadd.f32 0.0, %v1916
        %v1918 = vpop.f32.mrf.mxu0
        %v1919 = vadd.f32 0.0, %v1918
        %1920 = vmatmul.bf16.gmra.mxu0 %v1839
        %v1921 = vpop.f32.mrf.mxu0
        %v1922 = vadd.f32 0.0, %v1921
        %v1923 = vpop.f32.mrf.mxu0
        %v1924 = vadd.f32 0.0, %v1923
        %1925 = vmatmul.bf16.gmra.mxu0 %v1842
        %v1926 = vpop.f32.mrf.mxu0
        %v1927 = vadd.f32 0.0, %v1926
        %v1928 = vpop.f32.mrf.mxu0
        %v1929 = vadd.f32 0.0, %v1928
        %1930 = vmatmul.bf16.gmra.mxu0 %v1845
        %v1931 = vpop.f32.mrf.mxu0
        %v1932 = vadd.f32 0.0, %v1931
        %v1933 = vpop.f32.mrf.mxu0
        %v1934 = vadd.f32 0.0, %v1933
        %1935 = vdwg.mxu0
        %v1968 = vunpack.c.l.b16 %v1655
        %v1969 = vunpack.c.h.b16 %v1655
        %v1970 = vunpack.c.l.b16 %v1656
        %v1971 = vunpack.c.h.b16 %v1656
        %v1972 = vunpack.c.l.b16 %v1657
        %v1973 = vunpack.c.h.b16 %v1657
        %v1974 = vunpack.c.l.b16 %v1658
        %v1975 = vunpack.c.h.b16 %v1658
        %v1976 = vunpack.c.l.b16 %v1659
        %v1977 = vunpack.c.h.b16 %v1659
        %v1978 = vunpack.c.l.b16 %v1660
        %v1979 = vunpack.c.h.b16 %v1660
        %v1980 = vunpack.c.l.b16 %v1661
        %v1981 = vunpack.c.h.b16 %v1661
        %v1982 = vunpack.c.l.b16 %v1662
        %v1983 = vunpack.c.h.b16 %v1662
        %v1984 = vunpack.c.l.b16 %v1663
        %v1985 = vunpack.c.h.b16 %v1663
        %v1986 = vunpack.c.l.b16 %v1664
        %v1987 = vunpack.c.h.b16 %v1664
        %v1988 = vunpack.c.l.b16 %v1665
        %v1989 = vunpack.c.h.b16 %v1665
        %v1990 = vunpack.c.l.b16 %v1666
        %v1991 = vunpack.c.h.b16 %v1666
        %v1992 = vunpack.c.l.b16 %v1667
        %v1993 = vunpack.c.h.b16 %v1667
        %v1994 = vunpack.c.l.b16 %v1668
        %v1995 = vunpack.c.h.b16 %v1668
        %v1996 = vunpack.c.l.b16 %v1669
        %v1997 = vunpack.c.h.b16 %v1669
        %v1998 = vunpack.c.l.b16 %v1670
        %v1999 = vunpack.c.h.b16 %v1670
        %v2000 = vunpack.c.l.b16 %v1671
        %v2001 = vunpack.c.h.b16 %v1671
        %v2002 = vunpack.c.l.b16 %v1672
        %v2003 = vunpack.c.h.b16 %v1672
        %v2004 = vunpack.c.l.b16 %v1673
        %v2005 = vunpack.c.h.b16 %v1673
        %v2006 = vunpack.c.l.b16 %v1674
        %v2007 = vunpack.c.h.b16 %v1674
        %v2008 = vunpack.c.l.b16 %v1675
        %v2009 = vunpack.c.h.b16 %v1675
        %v2010 = vunpack.c.l.b16 %v1676
        %v2011 = vunpack.c.h.b16 %v1676
        %v2012 = vunpack.c.l.b16 %v1677
        %v2013 = vunpack.c.h.b16 %v1677
        %v2014 = vunpack.c.l.b16 %v1678
        %v2015 = vunpack.c.h.b16 %v1678
        %v2016 = vunpack.c.l.b16 %v1679
        %v2017 = vunpack.c.h.b16 %v1679
        %v2018 = vunpack.c.l.b16 %v1680
        %v2019 = vunpack.c.h.b16 %v1680
        %v2020 = vunpack.c.l.b16 %v1681
        %v2021 = vunpack.c.h.b16 %v1681
        %v2022 = vunpack.c.l.b16 %v1682
        %v2023 = vunpack.c.h.b16 %v1682
        %v2024 = vunpack.c.l.b16 %v1683
        %v2025 = vunpack.c.h.b16 %v1683
        %v2026 = vunpack.c.l.b16 %v1684
        %v2027 = vunpack.c.h.b16 %v1684
        %v2028 = vunpack.c.l.b16 %v1685
        %v2029 = vunpack.c.h.b16 %v1685
        %v2030 = vunpack.c.l.b16 %v1686
        %v2031 = vunpack.c.h.b16 %v1686
        %v2032 = vpack.c.b16 %v1970, %v1968
        %v2033 = vpack.c.b16 %v1971, %v1969
        %v2034 = vpack.c.b16 %v1974, %v1972
        %v2035 = vpack.c.b16 %v1975, %v1973
        %v2036 = vpack.c.b16 %v1978, %v1976
        %v2037 = vpack.c.b16 %v1979, %v1977
        %v2038 = vpack.c.b16 %v1982, %v1980
        %v2039 = vpack.c.b16 %v1983, %v1981
        %v2040 = vpack.c.b16 %v1986, %v1984
        %v2041 = vpack.c.b16 %v1987, %v1985
        %v2042 = vpack.c.b16 %v1990, %v1988
        %v2043 = vpack.c.b16 %v1991, %v1989
        %v2044 = vpack.c.b16 %v1994, %v1992
        %v2045 = vpack.c.b16 %v1995, %v1993
        %v2046 = vpack.c.b16 %v1998, %v1996
        %v2047 = vpack.c.b16 %v1999, %v1997
        %v2048 = vpack.c.b16 %v2002, %v2000
        %v2049 = vpack.c.b16 %v2003, %v2001
        %v2050 = vpack.c.b16 %v2006, %v2004
        %v2051 = vpack.c.b16 %v2007, %v2005
        %v2052 = vpack.c.b16 %v2010, %v2008
        %v2053 = vpack.c.b16 %v2011, %v2009
        %v2054 = vpack.c.b16 %v2014, %v2012
        %v2055 = vpack.c.b16 %v2015, %v2013
        %v2056 = vpack.c.b16 %v2018, %v2016
        %v2057 = vpack.c.b16 %v2019, %v2017
        %v2058 = vpack.c.b16 %v2022, %v2020
        %v2059 = vpack.c.b16 %v2023, %v2021
        %v2060 = vpack.c.b16 %v2026, %v2024
        %v2061 = vpack.c.b16 %v2027, %v2025
        %v2062 = vpack.c.b16 %v2030, %v2028
        %v2063 = vpack.c.b16 %v2031, %v2029
        %2096 = vmatpush.bf16.msra.mxu0 %v1646
        %2097 = vmatpush.bf16.msra.mxu0 %v1645
        %2098 = vmatpush.bf16.msra.mxu0 %v1644
        %2099 = vmatpush.bf16.msra.mxu0 %v1643
        %2100 = vmatpush.bf16.msra.mxu0 %v1642
        %2101 = vmatpush.bf16.msra.mxu0 %v1641
        %2102 = vmatpush.bf16.msra.mxu0 %v1640
        %2103 = vmatpush.bf16.msra.mxu0 %v1639
        %2104 = vmatmul.bf16.gmra.mxu0 %v2032
        %v2105 = vpop.f32.mrf.mxu0
        %v2106 = vadd.f32 %v1857, %v2105
        %v2107 = vpop.f32.mrf.mxu0
        %v2108 = vadd.f32 %v1859, %v2107
        %2109 = vmatmul.bf16.gmra.mxu0 %v2034
        %v2110 = vpop.f32.mrf.mxu0
        %v2111 = vadd.f32 %v1862, %v2110
        %v2112 = vpop.f32.mrf.mxu0
        %v2113 = vadd.f32 %v1864, %v2112
        %2114 = vmatmul.bf16.gmra.mxu0 %v2036
        %v2115 = vpop.f32.mrf.mxu0
        %v2116 = vadd.f32 %v1867, %v2115
        %v2117 = vpop.f32.mrf.mxu0
        %v2118 = vadd.f32 %v1869, %v2117
        %2119 = vmatmul.bf16.gmra.mxu0 %v2038
        %v2120 = vpop.f32.mrf.mxu0
        %v2121 = vadd.f32 %v1872, %v2120
        %v2122 = vpop.f32.mrf.mxu0
        %v2123 = vadd.f32 %v1874, %v2122
        %2124 = vmatmul.bf16.gmra.mxu0 %v2040
        %v2125 = vpop.f32.mrf.mxu0
        %v2126 = vadd.f32 %v1877, %v2125
        %v2127 = vpop.f32.mrf.mxu0
        %v2128 = vadd.f32 %v1879, %v2127
        %2129 = vmatmul.bf16.gmra.mxu0 %v2042
        %v2130 = vpop.f32.mrf.mxu0
        %v2131 = vadd.f32 %v1882, %v2130
        %v2132 = vpop.f32.mrf.mxu0
        %v2133 = vadd.f32 %v1884, %v2132
        %2134 = vmatmul.bf16.gmra.mxu0 %v2044
        %v2135 = vpop.f32.mrf.mxu0
        %v2136 = vadd.f32 %v1887, %v2135
        %v2137 = vpop.f32.mrf.mxu0
        %v2138 = vadd.f32 %v1889, %v2137
        %2139 = vmatmul.bf16.gmra.mxu0 %v2046
        %v2140 = vpop.f32.mrf.mxu0
        %v2141 = vadd.f32 %v1892, %v2140
        %v2142 = vpop.f32.mrf.mxu0
        %v2143 = vadd.f32 %v1894, %v2142
        %2144 = vmatmul.bf16.gmra.mxu0 %v2048
        %v2145 = vpop.f32.mrf.mxu0
        %v2146 = vadd.f32 %v1897, %v2145
        %v2147 = vpop.f32.mrf.mxu0
        %v2148 = vadd.f32 %v1899, %v2147
        %2149 = vmatmul.bf16.gmra.mxu0 %v2050
        %v2150 = vpop.f32.mrf.mxu0
        %v2151 = vadd.f32 %v1902, %v2150
        %v2152 = vpop.f32.mrf.mxu0
        %v2153 = vadd.f32 %v1904, %v2152
        %2154 = vmatmul.bf16.gmra.mxu0 %v2052
        %v2155 = vpop.f32.mrf.mxu0
        %v2156 = vadd.f32 %v1907, %v2155
        %v2157 = vpop.f32.mrf.mxu0
        %v2158 = vadd.f32 %v1909, %v2157
        %2159 = vmatmul.bf16.gmra.mxu0 %v2054
        %v2160 = vpop.f32.mrf.mxu0
        %v2161 = vadd.f32 %v1912, %v2160
        %v2162 = vpop.f32.mrf.mxu0
        %v2163 = vadd.f32 %v1914, %v2162
        %2164 = vmatmul.bf16.gmra.mxu0 %v2056
        %v2165 = vpop.f32.mrf.mxu0
        %v2166 = vadd.f32 %v1917, %v2165
        %v2167 = vpop.f32.mrf.mxu0
        %v2168 = vadd.f32 %v1919, %v2167
        %2169 = vmatmul.bf16.gmra.mxu0 %v2058
        %v2170 = vpop.f32.mrf.mxu0
        %v2171 = vadd.f32 %v1922, %v2170
        %v2172 = vpop.f32.mrf.mxu0
        %v2173 = vadd.f32 %v1924, %v2172
        %2174 = vmatmul.bf16.gmra.mxu0 %v2060
        %v2175 = vpop.f32.mrf.mxu0
        %v2176 = vadd.f32 %v1927, %v2175
        %v2177 = vpop.f32.mrf.mxu0
        %v2178 = vadd.f32 %v1929, %v2177
        %2179 = vmatmul.bf16.gmra.mxu0 %v2062
        %v2180 = vpop.f32.mrf.mxu0
        %v2181 = vadd.f32 %v1932, %v2180
        %v2182 = vpop.f32.mrf.mxu0
        %v2183 = vadd.f32 %v1934, %v2182
        %2184 = vdwg.mxu0
        %2185 = vmatpush.bf16.msra.mxu0 %v1654
        %2186 = vmatpush.bf16.msra.mxu0 %v1653
        %2187 = vmatpush.bf16.msra.mxu0 %v1652
        %2188 = vmatpush.bf16.msra.mxu0 %v1651
        %2189 = vmatpush.bf16.msra.mxu0 %v1650
        %2190 = vmatpush.bf16.msra.mxu0 %v1649
        %2191 = vmatpush.bf16.msra.mxu0 %v1648
        %2192 = vmatpush.bf16.msra.mxu0 %v1647
        %2193 = vmatmul.bf16.gmra.mxu0 %v2033
        %v2194 = vpop.f32.mrf.mxu0
        %v2195 = vadd.f32 %v2106, %v2194
        %v2196 = vpop.f32.mrf.mxu0
        %v2197 = vadd.f32 %v2108, %v2196
        %2198 = vmatmul.bf16.gmra.mxu0 %v2035
        %v2199 = vpop.f32.mrf.mxu0
        %v2200 = vadd.f32 %v2111, %v2199
        %v2201 = vpop.f32.mrf.mxu0
        %v2202 = vadd.f32 %v2113, %v2201
        %2203 = vmatmul.bf16.gmra.mxu0 %v2037
        %v2204 = vpop.f32.mrf.mxu0
        %v2205 = vadd.f32 %v2116, %v2204
        %v2206 = vpop.f32.mrf.mxu0
        %v2207 = vadd.f32 %v2118, %v2206
        %2208 = vmatmul.bf16.gmra.mxu0 %v2039
        %v2209 = vpop.f32.mrf.mxu0
        %v2210 = vadd.f32 %v2121, %v2209
        %v2211 = vpop.f32.mrf.mxu0
        %v2212 = vadd.f32 %v2123, %v2211
        %2213 = vmatmul.bf16.gmra.mxu0 %v2041
        %v2214 = vpop.f32.mrf.mxu0
        %v2215 = vadd.f32 %v2126, %v2214
        %v2216 = vpop.f32.mrf.mxu0
        %v2217 = vadd.f32 %v2128, %v2216
        %2218 = vmatmul.bf16.gmra.mxu0 %v2043
        %v2219 = vpop.f32.mrf.mxu0
        %v2220 = vadd.f32 %v2131, %v2219
        %v2221 = vpop.f32.mrf.mxu0
        %v2222 = vadd.f32 %v2133, %v2221
        %2223 = vmatmul.bf16.gmra.mxu0 %v2045
        %v2224 = vpop.f32.mrf.mxu0
        %v2225 = vadd.f32 %v2136, %v2224
        %v2226 = vpop.f32.mrf.mxu0
        %v2227 = vadd.f32 %v2138, %v2226
        %2228 = vmatmul.bf16.gmra.mxu0 %v2047
        %v2229 = vpop.f32.mrf.mxu0
        %v2230 = vadd.f32 %v2141, %v2229
        %v2231 = vpop.f32.mrf.mxu0
        %v2232 = vadd.f32 %v2143, %v2231
        %2233 = vmatmul.bf16.gmra.mxu0 %v2049
        %v2234 = vpop.f32.mrf.mxu0
        %v2235 = vadd.f32 %v2146, %v2234
        %v2236 = vpop.f32.mrf.mxu0
        %v2237 = vadd.f32 %v2148, %v2236
        %2238 = vmatmul.bf16.gmra.mxu0 %v2051
        %v2239 = vpop.f32.mrf.mxu0
        %v2240 = vadd.f32 %v2151, %v2239
        %v2241 = vpop.f32.mrf.mxu0
        %v2242 = vadd.f32 %v2153, %v2241
        %2243 = vmatmul.bf16.gmra.mxu0 %v2053
        %v2244 = vpop.f32.mrf.mxu0
        %v2245 = vadd.f32 %v2156, %v2244
        %v2246 = vpop.f32.mrf.mxu0
        %v2247 = vadd.f32 %v2158, %v2246
        %2248 = vmatmul.bf16.gmra.mxu0 %v2055
        %v2249 = vpop.f32.mrf.mxu0
        %v2250 = vadd.f32 %v2161, %v2249
        %v2251 = vpop.f32.mrf.mxu0
        %v2252 = vadd.f32 %v2163, %v2251
        %2253 = vmatmul.bf16.gmra.mxu0 %v2057
        %v2254 = vpop.f32.mrf.mxu0
        %v2255 = vadd.f32 %v2166, %v2254
        %v2256 = vpop.f32.mrf.mxu0
        %v2257 = vadd.f32 %v2168, %v2256
        %2258 = vmatmul.bf16.gmra.mxu0 %v2059
        %v2259 = vpop.f32.mrf.mxu0
        %v2260 = vadd.f32 %v2171, %v2259
        %v2261 = vpop.f32.mrf.mxu0
        %v2262 = vadd.f32 %v2173, %v2261
        %2263 = vmatmul.bf16.gmra.mxu0 %v2061
        %v2264 = vpop.f32.mrf.mxu0
        %v2265 = vadd.f32 %v2176, %v2264
        %v2266 = vpop.f32.mrf.mxu0
        %v2267 = vadd.f32 %v2178, %v2266
        %2268 = vmatmul.bf16.gmra.mxu0 %v2063
        %v2269 = vpop.f32.mrf.mxu0
        %v2270 = vadd.f32 %v2181, %v2269
        %v2271 = vpop.f32.mrf.mxu0
        %v2272 = vadd.f32 %v2183, %v2271
        %2273 = vdwg.mxu0
        %v2274 = vmax.f32 %v2195, 0.0
        %v2275 = vmax.f32 %v2197, 0.0
        %v2276 = vmax.f32 %v2200, 0.0
        %v2277 = vmax.f32 %v2202, 0.0
        %v2278 = vmax.f32 %v2205, 0.0
        %v2279 = vmax.f32 %v2207, 0.0
        %v2280 = vmax.f32 %v2210, 0.0
        %v2281 = vmax.f32 %v2212, 0.0
        %v2282 = vmax.f32 %v2215, 0.0
        %v2283 = vmax.f32 %v2217, 0.0
        %v2284 = vmax.f32 %v2220, 0.0
        %v2285 = vmax.f32 %v2222, 0.0
        %v2286 = vmax.f32 %v2225, 0.0
        %v2287 = vmax.f32 %v2227, 0.0
        %v2288 = vmax.f32 %v2230, 0.0
        %v2289 = vmax.f32 %v2232, 0.0
        %v2290 = vmax.f32 %v2235, 0.0
        %v2291 = vmax.f32 %v2237, 0.0
        %v2292 = vmax.f32 %v2240, 0.0
        %v2293 = vmax.f32 %v2242, 0.0
        %v2294 = vmax.f32 %v2245, 0.0
        %v2295 = vmax.f32 %v2247, 0.0
        %v2296 = vmax.f32 %v2250, 0.0
        %v2297 = vmax.f32 %v2252, 0.0
        %v2298 = vmax.f32 %v2255, 0.0
        %v2299 = vmax.f32 %v2257, 0.0
        %v2300 = vmax.f32 %v2260, 0.0
        %v2301 = vmax.f32 %v2262, 0.0
        %v2302 = vmax.f32 %v2265, 0.0
        %v2303 = vmax.f32 %v2267, 0.0
        %v2304 = vmax.f32 %v2270, 0.0
        %v2305 = vmax.f32 %v2272, 0.0
        %v2306 = vpack.c.bf16 %v2275, %v2274
        %v2307 = vpack.c.bf16 %v2277, %v2276
        %v2308 = vpack.c.bf16 %v2279, %v2278
        %v2309 = vpack.c.bf16 %v2281, %v2280
        %v2310 = vpack.c.bf16 %v2283, %v2282
        %v2311 = vpack.c.bf16 %v2285, %v2284
        %v2312 = vpack.c.bf16 %v2287, %v2286
        %v2313 = vpack.c.bf16 %v2289, %v2288
        %v2314 = vpack.c.bf16 %v2291, %v2290
        %v2315 = vpack.c.bf16 %v2293, %v2292
        %v2316 = vpack.c.bf16 %v2295, %v2294
        %v2317 = vpack.c.bf16 %v2297, %v2296
        %v2318 = vpack.c.bf16 %v2299, %v2298
        %v2319 = vpack.c.bf16 %v2301, %v2300
        %v2320 = vpack.c.bf16 %v2303, %v2302
        %v2321 = vpack.c.bf16 %v2305, %v2304
        %v2322 = vld [vmem:[%s8] sm:$0xf]
        %v2323 = vld [vmem:[%s9] sm:$0x3]
        %v2325 = vsel %vm574, %v2323, 0
        %2327 = vmatpush.bf16.msra.mxu0 0
        %2328 = vmatpush.bf16.msra.mxu0 0
        %2329 = vmatpush.bf16.msra.mxu0 0
        %2330 = vmatpush.bf16.msra.mxu0 0
        %2331 = vmatpush.bf16.msra.mxu0 0
        %2332 = vmatpush.bf16.msra.mxu0 0
        %2333 = vmatpush.bf16.msra.mxu0 0
        %2334 = vmatpush.bf16.msra.mxu0 %v628
        %2335 = vmatmul.bf16.gmra.mxu0 %v2325
        %v2336 = vpop.f32.mrf.mxu0
        %v2337 = vadd.f32 0.0, %v2336
        %v2338 = vpop.f32.mrf.mxu0
        %2339 = vdwg.mxu0
        %2341 = vst [vmem:[#allocation1] ss:$4 sm:$0xff] %v2322
        %v2342 = vld.sshfl [vmem:[#allocation1] sm:$0xff pattern:$0x73625140]
        %v2343 = vld.sshfl [vmem:[#allocation1 + $0x8] sm:$0xff pattern:$0x73625140]
        %2346 = vmatpush.bf16.msra.mxu0 %v2313
        %2347 = vmatpush.bf16.msra.mxu0 %v2312
        %2348 = vmatpush.bf16.msra.mxu0 %v2311
        %2349 = vmatpush.bf16.msra.mxu0 %v2310
        %2350 = vmatpush.bf16.msra.mxu0 %v2309
        %2351 = vmatpush.bf16.msra.mxu0 %v2308
        %2352 = vmatpush.bf16.msra.mxu0 %v2307
        %2353 = vmatpush.bf16.msra.mxu0 %v2306
        %2354 = vmatmul.bf16.gmra.mxu0 %v2342
        %v2355 = vpop.f32.mrf.mxu0
        %v2356 = vadd.f32 %v2337, %v2355
        %v2357 = vpop.f32.mrf.mxu0
        %2358 = vdwg.mxu0
        %2359 = vmatpush.bf16.msra.mxu0 %v2321
        %2360 = vmatpush.bf16.msra.mxu0 %v2320
        %2361 = vmatpush.bf16.msra.mxu0 %v2319
        %2362 = vmatpush.bf16.msra.mxu0 %v2318
        %2363 = vmatpush.bf16.msra.mxu0 %v2317
        %2364 = vmatpush.bf16.msra.mxu0 %v2316
        %2365 = vmatpush.bf16.msra.mxu0 %v2315
        %2366 = vmatpush.bf16.msra.mxu0 %v2314
        %2367 = vmatmul.bf16.gmra.mxu0 %v2343
        %v2368 = vpop.f32.mrf.mxu0
        %v2369 = vadd.f32 %v2356, %v2368
        %v2370 = vpop.f32.mrf.mxu0
        %2371 = vdwg.mxu0
        %vm2372 = vcmask 125952
        %2373 = vst.msk [vmem:[%s410] sm:$0xf] %vm2372, %v2369
        %s2374 = sand.u32 %s271, 1
        %s2375 = scalar_lea.sflag [#allocation4], %s2374
        %s2376 = sand.u32 %s271, 1
        %s2377 = smul.addr %s2376, 4
        %s2378 = scalar_lea.vmem [#allocation5], %s2377
        // Predicated region
        $region65: #{tpu_custom_call.1} parent=59 // pred_check
          %p2379 = pneg %p281
        $region66: #{tpu_custom_call.1} parent=59 // pred_check_branch
          %2381 = sbr.rel (%p2379) target = $region68
        $region67: #{tpu_custom_call.1} parent=59 // pred_region
          %2383 = vsyncadd %s2375, 0
          %s2384 = sadd.s32 %s30, %s29
          %s2385 = smul.addr %s2384, 4
          %s2386 = scalar_lea.hbm %s10, %s2385
          %s2388 = sshll.u32 %s2378, 4
          %s2389 = int_to_ptr.vmem [resolvable:$true] %s2388
          %s2390 = sshll.u32 %s2386, 4
          %s2391 = int_to_ptr.hbm [resolvable:$true] %s2390
          %2393 = dma.vmem_to_hbm [thread:$0]  %s2389, 64, %s2391, %s2375
        $region68: #{tpu_custom_call.1} parent=59 // pred_fallthru
          _
      $region60: #{tpu_custom_call.1} parent=5 // pred_fallthru
        _
      %p2394 = scmp.le.s32.totalorder 2, %s20
      // Predicated region
      $region69: #{tpu_custom_call.1} parent=5 // pred_check
        %p2395 = pneg %p2394
      $region70: #{tpu_custom_call.1} parent=5 // pred_check_branch
        %2397 = sbr.rel (%p2395) target = $region72
      $region71: #{tpu_custom_call.1} parent=5 // pred_region
        %s2398 = ssub.s32 %s20, 2
        // Predicated region
        $region73: #{tpu_custom_call.1} parent=71 // pred_check
          %p2399 = pneg %p287
        $region74: #{tpu_custom_call.1} parent=71 // pred_check_branch
          %2401 = sbr.rel (%p2399) target = $region76
        $region75: #{tpu_custom_call.1} parent=71 // pred_region
          %s2402 = sand.u32 %s272, 1
          %s2403 = scalar_lea.sflag [#allocation4], %s2402
          %s2404 = sand.u32 %s272, 1
          %s2405 = smul.addr %s2404, 4
          %s2406 = scalar_lea.vmem [#allocation5], %s2405
          %2408 = dma.done %s2403, 64
        $region76: #{tpu_custom_call.1} parent=71 // pred_fallthru
          _
      $region72: #{tpu_custom_call.1} parent=5 // pred_fallthru
        _
    $region6: #{tpu_custom_call.1} parent=1 // loop_footer
      %s24 = sadd.s32 1, %s20
    $region7: #{tpu_custom_call.1} parent=1 // loop_footer_branch
      %19 = sbr.rel target = $region3
    $region8: #{tpu_custom_call.1} parent=1 // loop_exit
      _
    %2409 = vsyncpa [#allocation3], 1
    %s2410 = scalar_lea.sflag [#allocation3], 1
    %2411 = vsyncpa %s2410, 1
    %2412 = vsyncpa [#allocation4], 1
    %s2413 = scalar_lea.sflag [#allocation4], 1
    %2414 = vsyncpa %s2413, 1

</llo_original>
